<compile_context>
chip_gen: v7x
topology: tpu7x:2x2x1
jax: 0.10.0
libtpu: 0.0.40
codegen_flags: <defaults>
</compile_context>

<pallas_src>
import functools

import jax
import jax.numpy as jnp
from jax.experimental import pallas as pl
from jax.experimental.pallas import tpu as pltpu

LANE = 128


# ------------------------------ fused kernel ------------------------------- #

def _fused_forward_kernel(
    img_ref,        # (TB, C*H*W)     bf16  flattened normal images (batch tile)
    patch_ref,      # (TB, C*ps*ps)   bf16  patch p of the current batch tile
    w_img_ref,      # (C*H*W, E)      bf16  GAP folded into encoder weight
    w_patch_ref,    # (C*ps*ps, E)    bf16  GAP folded into encoder weight
    enc_b_ref,      # (1, E)          f32   encoder bias
    f_w_ref,        # (E, Np)         bf16  f_proj_head weight (padded to 128)
    f_b_ref,        # (1, Np)         f32   f_proj_head bias   (padded)
    g_ref,          # (E, Np)         bf16  gi_w @ gf_block[inv_perm[p]]
    patch_b_ref,    # (1, Np)         f32   folded gi/gf bias  (padded)
    img_out_ref,    # (TB, Np)        f32
    patch_out_ref,  # (TB, Np)        f32
):
    p = pl.program_id(1)
    dot = functools.partial(jnp.dot, preferred_element_type=jnp.float32)

    @pl.when(p == 0)
    def _first_patch_step():
        # Patch accumulator starts at the folded (gi_b, gf_b) bias.
        patch_out_ref[...] = (jnp.zeros(patch_out_ref.shape, jnp.float32)
                              + patch_b_ref[...])
        # Image branch, once per batch tile: fused GAP+encoder matmul, ReLU
        # (f32), then f_proj_head.  Matmul operands bf16, accumulate f32.
        enc_img = jnp.maximum(
            dot(img_ref[...], w_img_ref[...]) + enc_b_ref[...], 0.0)
        img_out_ref[...] = (dot(enc_img.astype(jnp.bfloat16), f_w_ref[...])
                            + f_b_ref[...])

    # Patch branch, one patch per grid step: fused GAP+encoder matmul, ReLU,
    # then the folded (g_initial @ permuted g_final block) head, accumulated
    # into the resident output block across the "arbitrary" patch axis.
    enc_p = jnp.maximum(
        dot(patch_ref[...], w_patch_ref[...]) + enc_b_ref[...], 0.0)
    patch_out_ref[...] += dot(enc_p.astype(jnp.bfloat16), g_ref[...])


# ------------------------------ model wrapper ------------------------------ #

def _round_up(x, m):
    return ((x + m - 1) // m) * m


def _pad_cols(x, n):
    return jnp.pad(x, ((0, 0), (0, n - x.shape[1])))


def _batch_tile(b):
    # Whole (small) batch in one tile; at realistic batch sizes stream 128-row
    # tiles through VMEM (sized for v7x's 64 MiB with double-buffer headroom).
    if b > 128 and b % 128 == 0:
        return 128
    return b


def init_params(key, in_channels, encoder_dim, projection_dim, num_patches):
    """Deterministic init mimicking nn.Linear's U(-1/sqrt(fan_in), 1/sqrt(fan_in))."""
    def linear_init(k, fan_in, fan_out):
        kw, kb = jax.random.split(k)
        bound = 1.0 / jnp.sqrt(fan_in)
        w = jax.random.uniform(kw, (fan_in, fan_out), jnp.float32, -bound, bound)
        b = jax.random.uniform(kb, (1, fan_out), jnp.float32, -bound, bound)
        return w, b

    ks = jax.random.split(key, 4)
    params = {}
    params["enc_w"], params["enc_b"] = linear_init(ks[0], in_channels, encoder_dim)
    params["f_w"], params["f_b"] = linear_init(ks[1], encoder_dim, projection_dim)
    params["gi_w"], params["gi_b"] = linear_init(ks[2], encoder_dim, projection_dim)
    params["gf_w"], params["gf_b"] = linear_init(
        ks[3], projection_dim * num_patches, projection_dim)
    return params


@functools.partial(jax.jit, static_argnames=("patch_size",))
def encoder_model_forward(params, normal_imgs, patching_imgs, perm, patch_size):
    """Reproduces EncoderModel.forward(normal_imgs, patching_imgs)."""
    B, C, H, W = normal_imgs.shape
    Bp, Cp, Hp, Wp = patching_imgs.shape
    assert B == Bp, "both branches are tiled over the same batch axis"
    ps = patch_size
    nh, nw = Hp // ps, Wp // ps
    P = nh * nw
    E = params["enc_w"].shape[1]
    Pd = params["f_w"].shape[1]
    Np = _round_up(Pd, LANE)                 # lane-dense head / output width

    # ------------- activations (bf16 operands: half the HBM->VMEM bytes) ----
    img_flat = normal_imgs.reshape(B, C * H * W).astype(jnp.bfloat16)

    # Patch branch: space-to-depth with p = wi*nh + hi (torch loop order:
    # width offsets outer, height offsets inner); layout (P, B, C*ps*ps) so
    # each grid step DMAs one contiguous (TB, C*ps*ps) slab.
    # TODO(synk): at realistic image sizes extract patches directly from the
    # NCHW tensor via BlockSpec index_map offsets instead of this XLA
    # transpose (it is one extra HBM round trip before the kernel).
    x = patching_imgs.reshape(Bp, Cp, nh, ps, nw, ps)
    x = jnp.transpose(x, (4, 2, 0, 1, 3, 5))              # (nw, nh, B, C, ph, pw)
    patch_flat = x.reshape(P, Bp, Cp * ps * ps).astype(jnp.bfloat16)

    # ------------- trace-time weight folding ---------------------------------
    # GAP is an averaging matrix; fold it into the encoder weight so each
    # branch is one big-K matmul (no lane-sparse N=C intermediate).
    enc_w = params["enc_w"]
    w_img = (jnp.repeat(enc_w, H * W, axis=0) / float(H * W)).astype(jnp.bfloat16)
    w_patch = (jnp.repeat(enc_w, ps * ps, axis=0) / float(ps * ps)).astype(jnp.bfloat16)
    enc_b = params["enc_b"]                                # (1, E) f32

    f_w = _pad_cols(params["f_w"], Np).astype(jnp.bfloat16)
    f_b = _pad_cols(params["f_b"], Np)

    # Patch head: fold g_proj_head_initial and the permuted g_proj_head_final
    # block into one (E, Np) weight per patch, plus a folded bias:
    #   concat_j feats[perm[j]] @ gf_w + gf_b
    #     == sum_p relu_p @ (gi_w @ gf_blk[inv_perm[p]])
    #        + gi_b @ sum_j gf_blk[j] + gf_b
    # TODO(synk): torch.randperm draws a fresh permutation every forward; it is
    # supplied deterministically here and consumed by this tiny XLA gather.
    inv_perm = jnp.argsort(perm)
    gf_blocks = params["gf_w"].reshape(P, Pd, Pd)
    g = jnp.einsum("ed,pdn->pen", params["gi_w"], gf_blocks[inv_perm])   # (P, E, Pd)
    g = jnp.pad(g, ((0, 0), (0, 0), (0, Np - Pd))).astype(jnp.bfloat16)  # (P, E, Np)
    patch_b = _pad_cols(params["gi_b"] @ gf_blocks.sum(0) + params["gf_b"], Np)

    # ------------- batch-tiled, patch-accumulating pipeline ------------------
    TB = _batch_tile(B)
    K_img = C * H * W
    K_patch = Cp * ps * ps
    grid = (B // TB, P)

    img_out, patch_out = pl.pallas_call(
        _fused_forward_kernel,
        grid=grid,
        in_specs=[
            pl.BlockSpec((TB, K_img), lambda i, p: (i, 0)),              # images
            pl.BlockSpec((None, TB, K_patch), lambda i, p: (p, i, 0)),   # patch p
            pl.BlockSpec((K_img, E), lambda i, p: (0, 0)),               # w_img (resident)
            pl.BlockSpec((K_patch, E), lambda i, p: (0, 0)),             # w_patch (resident)
            pl.BlockSpec((1, E), lambda i, p: (0, 0)),                   # enc_b
            pl.BlockSpec((E, Np), lambda i, p: (0, 0)),                  # f_w
            pl.BlockSpec((1, Np), lambda i, p: (0, 0)),                  # f_b
            pl.BlockSpec((None, E, Np), lambda i, p: (p, 0, 0)),         # G[p]
            pl.BlockSpec((1, Np), lambda i, p: (0, 0)),                  # folded bias
        ],
        out_specs=(
            pl.BlockSpec((TB, Np), lambda i, p: (i, 0)),
            pl.BlockSpec((TB, Np), lambda i, p: (i, 0)),
        ),
        out_shape=(
            jax.ShapeDtypeStruct((B, Np), jnp.float32),
            jax.ShapeDtypeStruct((B, Np), jnp.float32),
        ),
        compiler_params=pltpu.CompilerParams(
            dimension_semantics=("parallel", "arbitrary"),
            vmem_limit_bytes=32 * 1024 * 1024),
    )(img_flat, patch_flat, w_img, w_patch, enc_b, f_w, f_b, g, patch_b)

    return img_out[:, :Pd], patch_out[:, :Pd]


# ------------------------- pure-JAX reference (check) ---------------------- #

def reference_forward(params, normal_imgs, patching_imgs, perm, patch_size):
    """Direct transcription of the PyTorch forward (with the synthetic encoder)."""
    def encoder(x):                         # NCHW -> (N, E)
        pooled = jnp.mean(x, axis=(2, 3))
        return jnp.maximum(jnp.dot(pooled, params["enc_w"]) + params["enc_b"], 0.0)

    def linear(x, w, b):
        return jnp.dot(x, w) + b

    image_features = linear(encoder(normal_imgs), params["f_w"], params["f_b"])

    bs, c, h, w = patching_imgs.shape
    ps = patch_size
    feats = []
    for wi in range(w // ps):               # width offsets outer
        for hi in range(h // ps):           # height offsets inner
            patch = patching_imgs[:, :, hi * ps:(hi + 1) * ps, wi * ps:(wi + 1) * ps]
            feats.append(linear(encoder(patch), params["gi_w"], params["gi_b"]))
    perm_host = [int(i) for i in jax.device_get(perm)]
    feats = [feats[i] for i in perm_host]
    cat = jnp.concatenate(feats, axis=1)
    patch_features = linear(cat, params["gf_w"], params["gf_b"])
    return image_features, patch_features


# ---------------------------------- main ----------------------------------- #

if __name__ == "__main__":
    B, C, H, W = 2, 4, 16, 16
    PATCH_SIZE = 8
    NUM_PATCHES = (H // PATCH_SIZE) * (W // PATCH_SIZE)   # 4
    ENCODER_DIM = 32
    PROJECTION_DIM = 16

    root = jax.random.PRNGKey(0)
    k_param, k_img, k_patch, k_perm = jax.random.split(root, 4)

    params = init_params(k_param, C, ENCODER_DIM, PROJECTION_DIM, NUM_PATCHES)
    normal_imgs = jax.random.normal(k_img, (B, C, H, W), jnp.float32)
    patching_imgs = jax.random.normal(k_patch, (B, C, H, W), jnp.float32)
    perm = jax.random.permutation(k_perm, NUM_PATCHES)

    image_features, patch_features = encoder_model_forward(
        params, normal_imgs, patching_imgs, perm, PATCH_SIZE)
    jax.block_until_ready((image_features, patch_features))

    assert image_features.shape == (B, PROJECTION_DIM)
    assert patch_features.shape == (B, PROJECTION_DIM)

    # bf16 matmul operands / f32 accumulation vs f32 reference: 1e-2 tolerance.
    ref_img, ref_patch = reference_forward(
        params, normal_imgs, patching_imgs, perm, PATCH_SIZE)
    assert jnp.allclose(image_features, ref_img, atol=1e-2, rtol=1e-2)
    assert jnp.allclose(patch_features, ref_patch, atol=1e-2, rtol=1e-2)

    print("KERNEL_OK")
</pallas_src>

<mosaic_0001>
module attributes {stable_mosaic.version = 11 : i64} {
  func.func @_fused_forward_kernel(%arg0: i32, %arg1: i32, %arg2: memref<2x1024xbf16, #tpu.memory_space<vmem>>, %arg3: memref<1x2x256xbf16, #tpu.memory_space<vmem>>, %arg4: memref<1024x32xbf16, #tpu.memory_space<vmem>>, %arg5: memref<256x32xbf16, #tpu.memory_space<vmem>>, %arg6: memref<1x32xf32, #tpu.memory_space<vmem>>, %arg7: memref<32x128xbf16, #tpu.memory_space<vmem>>, %arg8: memref<1x128xf32, #tpu.memory_space<vmem>>, %arg9: memref<1x32x128xbf16, #tpu.memory_space<vmem>>, %arg10: memref<1x128xf32, #tpu.memory_space<vmem>>, %arg11: memref<2x128xf32, #tpu.memory_space<vmem>>, %arg12: memref<2x128xf32, #tpu.memory_space<vmem>>) attributes {dimension_semantics = [#tpu.dimension_semantics<parallel>, #tpu.dimension_semantics<arbitrary>], iteration_bounds = array<i64: 1, 4>, scalar_prefetch = 0 : i64, scratch_operands = 0 : i64, tpu.core_type = #tpu.core_type<tc>, window_params = [{transform_indices = @transform_0, window_bounds = array<i64: 2, 1024>}, {transform_indices = @transform_1, window_bounds = array<i64: 1, 2, 256>}, {pipeline_mode = #tpu.pipeline_mode<synchronous>, transform_indices = @transform_2, window_bounds = array<i64: 1024, 32>}, {pipeline_mode = #tpu.pipeline_mode<synchronous>, transform_indices = @transform_3, window_bounds = array<i64: 256, 32>}, {pipeline_mode = #tpu.pipeline_mode<synchronous>, transform_indices = @transform_4, window_bounds = array<i64: 1, 32>}, {pipeline_mode = #tpu.pipeline_mode<synchronous>, transform_indices = @transform_5, window_bounds = array<i64: 32, 128>}, {pipeline_mode = #tpu.pipeline_mode<synchronous>, transform_indices = @transform_6, window_bounds = array<i64: 1, 128>}, {transform_indices = @transform_7, window_bounds = array<i64: 1, 32, 128>}, {pipeline_mode = #tpu.pipeline_mode<synchronous>, transform_indices = @transform_8, window_bounds = array<i64: 1, 128>}, {transform_indices = @transform_9, window_bounds = array<i64: 2, 128>}, {transform_indices = @transform_10, window_bounds = array<i64: 2, 128>}]} {
    %c0_i32 = arith.constant 0 : i32
    %0 = arith.cmpi eq, %arg1, %c0_i32 : i32
    %1 = arith.extui %0 : i1 to i32
    %c0_i32_0 = arith.constant 0 : i32
    %2 = arith.cmpi ne, %1, %c0_i32_0 : i32
    scf.if %2 {
      %cst_16 = arith.constant 0.000000e+00 : f32
      %19 = vector.broadcast %cst_16 : f32 to vector<2x128xf32>
      %c0_17 = arith.constant 0 : index
      %c0_18 = arith.constant 0 : index
      %20 = vector.load %arg10[%c0_17, %c0_18] : memref<1x128xf32, #tpu.memory_space<vmem>>, vector<1x128xf32>
      %21 = vector.broadcast %20 : vector<1x128xf32> to vector<2x128xf32>
      %22 = arith.addf %19, %21 : vector<2x128xf32>
      %c0_19 = arith.constant 0 : index
      %c0_20 = arith.constant 0 : index
      %23 = vector.load %arg12[%c0_19, %c0_20] : memref<2x128xf32, #tpu.memory_space<vmem>>, vector<2x128xf32>
      tpu.vector_store %arg12[%c0_19, %c0_20], %22 {strides = array<i32>} : memref<2x128xf32, #tpu.memory_space<vmem>>, vector<2x128xf32>,
      %c0_21 = arith.constant 0 : index
      %c0_22 = arith.constant 0 : index
      %24 = vector.load %arg2[%c0_21, %c0_22] : memref<2x1024xbf16, #tpu.memory_space<vmem>>, vector<2x1024xbf16>
      %c0_23 = arith.constant 0 : index
      %c0_24 = arith.constant 0 : index
      %25 = vector.load %arg4[%c0_23, %c0_24] : memref<1024x32xbf16, #tpu.memory_space<vmem>>, vector<1024x32xbf16>
      %cst_25 = arith.constant dense<0.000000e+00> : vector<2x32xf32>
      %26 = tpu.matmul %24, %25, %cst_25 {dimension_numbers = #tpu.dot_dimension_numbers<[1], [0], [0], [1], [0, 0, 1, 1], [], []>} : vector<2x1024xbf16>, vector<1024x32xbf16>, vector<2x32xf32> -> vector<2x32xf32>
      %c0_26 = arith.constant 0 : index
      %c0_27 = arith.constant 0 : index
      %27 = vector.load %arg6[%c0_26, %c0_27] : memref<1x32xf32, #tpu.memory_space<vmem>>, vector<1x32xf32>
      %28 = vector.broadcast %27 : vector<1x32xf32> to vector<2x32xf32>
      %29 = arith.addf %26, %28 : vector<2x32xf32>
      %cst_28 = arith.constant 0.000000e+00 : f32
      %30 = vector.broadcast %cst_28 : f32 to vector<2x32xf32>
      %31 = arith.maximumf %29, %30 : vector<2x32xf32>
      %32 = arith.truncf %31 : vector<2x32xf32> to vector<2x32xbf16>
      %c0_29 = arith.constant 0 : index
      %c0_30 = arith.constant 0 : index
      %33 = vector.load %arg7[%c0_29, %c0_30] : memref<32x128xbf16, #tpu.memory_space<vmem>>, vector<32x128xbf16>
      %cst_31 = arith.constant dense<0.000000e+00> : vector<2x128xf32>
      %34 = tpu.matmul %32, %33, %cst_31 {dimension_numbers = #tpu.dot_dimension_numbers<[1], [0], [0], [1], [0, 0, 1, 1], [], []>} : vector<2x32xbf16>, vector<32x128xbf16>, vector<2x128xf32> -> vector<2x128xf32>
      %c0_32 = arith.constant 0 : index
      %c0_33 = arith.constant 0 : index
      %35 = vector.load %arg8[%c0_32, %c0_33] : memref<1x128xf32, #tpu.memory_space<vmem>>, vector<1x128xf32>
      %36 = vector.broadcast %35 : vector<1x128xf32> to vector<2x128xf32>
      %37 = arith.addf %34, %36 : vector<2x128xf32>
      %c0_34 = arith.constant 0 : index
      %c0_35 = arith.constant 0 : index
      %38 = vector.load %arg11[%c0_34, %c0_35] : memref<2x128xf32, #tpu.memory_space<vmem>>, vector<2x128xf32>
      tpu.vector_store %arg11[%c0_34, %c0_35], %37 {strides = array<i32>} : memref<2x128xf32, #tpu.memory_space<vmem>>, vector<2x128xf32>,
    } else {
    }
    %c0 = arith.constant 0 : index
    %c0_1 = arith.constant 0 : index
    %c0_2 = arith.constant 0 : index
    %3 = vector.load %arg3[%c0, %c0_1, %c0_2] : memref<1x2x256xbf16, #tpu.memory_space<vmem>>, vector<1x2x256xbf16>
    %4 = vector.shape_cast %3 : vector<1x2x256xbf16> to vector<2x256xbf16>
    %c0_3 = arith.constant 0 : index
    %c0_4 = arith.constant 0 : index
    %5 = vector.load %arg5[%c0_3, %c0_4] : memref<256x32xbf16, #tpu.memory_space<vmem>>, vector<256x32xbf16>
    %cst = arith.constant dense<0.000000e+00> : vector<2x32xf32>
    %6 = tpu.matmul %4, %5, %cst {dimension_numbers = #tpu.dot_dimension_numbers<[1], [0], [0], [1], [0, 0, 1, 1], [], []>} : vector<2x256xbf16>, vector<256x32xbf16>, vector<2x32xf32> -> vector<2x32xf32>
    %c0_5 = arith.constant 0 : index
    %c0_6 = arith.constant 0 : index
    %7 = vector.load %arg6[%c0_5, %c0_6] : memref<1x32xf32, #tpu.memory_space<vmem>>, vector<1x32xf32>
    %8 = vector.broadcast %7 : vector<1x32xf32> to vector<2x32xf32>
    %9 = arith.addf %6, %8 : vector<2x32xf32>
    %cst_7 = arith.constant 0.000000e+00 : f32
    %10 = vector.broadcast %cst_7 : f32 to vector<2x32xf32>
    %11 = arith.maximumf %9, %10 : vector<2x32xf32>
    %c0_8 = arith.constant 0 : index
    %c0_9 = arith.constant 0 : index
    %12 = vector.load %arg12[%c0_8, %c0_9] : memref<2x128xf32, #tpu.memory_space<vmem>>, vector<2x128xf32>
    %13 = arith.truncf %11 : vector<2x32xf32> to vector<2x32xbf16>
    %c0_10 = arith.constant 0 : index
    %c0_11 = arith.constant 0 : index
    %c0_12 = arith.constant 0 : index
    %14 = vector.load %arg9[%c0_10, %c0_11, %c0_12] : memref<1x32x128xbf16, #tpu.memory_space<vmem>>, vector<1x32x128xbf16>
    %15 = vector.shape_cast %14 : vector<1x32x128xbf16> to vector<32x128xbf16>
    %cst_13 = arith.constant dense<0.000000e+00> : vector<2x128xf32>
    %16 = tpu.matmul %13, %15, %cst_13 {dimension_numbers = #tpu.dot_dimension_numbers<[1], [0], [0], [1], [0, 0, 1, 1], [], []>} : vector<2x32xbf16>, vector<32x128xbf16>, vector<2x128xf32> -> vector<2x128xf32>
    %17 = arith.addf %12, %16 : vector<2x128xf32>
    %c0_14 = arith.constant 0 : index
    %c0_15 = arith.constant 0 : index
    %18 = vector.load %arg12[%c0_14, %c0_15] : memref<2x128xf32, #tpu.memory_space<vmem>>, vector<2x128xf32>
    tpu.vector_store %arg12[%c0_14, %c0_15], %17 {strides = array<i32>} : memref<2x128xf32, #tpu.memory_space<vmem>>, vector<2x128xf32>,
    return
  }
  func.func @transform_0(%arg0: i32, %arg1: i32) -> (i32, i32) {
    %c0_i32 = arith.constant 0 : i32
    %c0_i32_0 = arith.constant 0 : i32
    return %arg0, %c0_i32 : i32, i32
  }
  func.func @transform_1(%arg0: i32, %arg1: i32) -> (i32, i32, i32) {
    %c0_i32 = arith.constant 0 : i32
    %c0_i32_0 = arith.constant 0 : i32
    return %arg1, %arg0, %c0_i32 : i32, i32, i32
  }
  func.func @transform_2(%arg0: i32, %arg1: i32) -> (i32, i32) {
    %c0_i32 = arith.constant 0 : i32
    %c0_i32_0 = arith.constant 0 : i32
    %c0_i32_1 = arith.constant 0 : i32
    return %c0_i32, %c0_i32_0 : i32, i32
  }
  func.func @transform_3(%arg0: i32, %arg1: i32) -> (i32, i32) {
    %c0_i32 = arith.constant 0 : i32
    %c0_i32_0 = arith.constant 0 : i32
    %c0_i32_1 = arith.constant 0 : i32
    return %c0_i32, %c0_i32_0 : i32, i32
  }
  func.func @transform_4(%arg0: i32, %arg1: i32) -> (i32, i32) {
    %c0_i32 = arith.constant 0 : i32
    %c0_i32_0 = arith.constant 0 : i32
    %c0_i32_1 = arith.constant 0 : i32
    return %c0_i32, %c0_i32_0 : i32, i32
  }
  func.func @transform_5(%arg0: i32, %arg1: i32) -> (i32, i32) {
    %c0_i32 = arith.constant 0 : i32
    %c0_i32_0 = arith.constant 0 : i32
    %c0_i32_1 = arith.constant 0 : i32
    return %c0_i32, %c0_i32_0 : i32, i32
  }
  func.func @transform_6(%arg0: i32, %arg1: i32) -> (i32, i32) {
    %c0_i32 = arith.constant 0 : i32
    %c0_i32_0 = arith.constant 0 : i32
    %c0_i32_1 = arith.constant 0 : i32
    return %c0_i32, %c0_i32_0 : i32, i32
  }
  func.func @transform_7(%arg0: i32, %arg1: i32) -> (i32, i32, i32) {
    %c0_i32 = arith.constant 0 : i32
    %c0_i32_0 = arith.constant 0 : i32
    %c0_i32_1 = arith.constant 0 : i32
    return %arg1, %c0_i32, %c0_i32_0 : i32, i32, i32
  }
  func.func @transform_8(%arg0: i32, %arg1: i32) -> (i32, i32) {
    %c0_i32 = arith.constant 0 : i32
    %c0_i32_0 = arith.constant 0 : i32
    %c0_i32_1 = arith.constant 0 : i32
    return %c0_i32, %c0_i32_0 : i32, i32
  }
  func.func @transform_9(%arg0: i32, %arg1: i32) -> (i32, i32) {
    %c0_i32 = arith.constant 0 : i32
    %c0_i32_0 = arith.constant 0 : i32
    return %arg0, %c0_i32 : i32, i32
  }
  func.func @transform_10(%arg0: i32, %arg1: i32) -> (i32, i32) {
    %c0_i32 = arith.constant 0 : i32
    %c0_i32_0 = arith.constant 0 : i32
    return %arg0, %c0_i32 : i32, i32
  }
}

</mosaic_0001>

<llo_original>
// kernel: encoder_model_forward.1
$region0: #{encoder_model_forward.1}
  #allocation0 [shape = 'u32[]', space=smem, size = 0x4, offset = 0x4, fixed_abs, tag = 'smem constant byte address 0x4 - core index']
  #allocation1 [shape = 'u32[144,128]{1,0:T(1,128)}', space=vmem, size = 0x12000, scoped, tag = 'internal scratch']
  %s0 = inlined_call_operand.vmem [shape: bf16[2,1024], index: 0, kind: input, shape index: {}]
  %s1 = inlined_call_operand.vmem [shape: bf16[4,2,256], index: 1, kind: input, shape index: {}]
  %s2 = inlined_call_operand.vmem [shape: bf16[1024,32], index: 2, kind: input, shape index: {}]
  %s3 = inlined_call_operand.vmem [shape: bf16[256,32], index: 3, kind: input, shape index: {}]
  %s4 = inlined_call_operand.vmem [shape: f32[1,32], index: 4, kind: input, shape index: {}]
  %s5 = inlined_call_operand.vmem [shape: bf16[32,128], index: 5, kind: input, shape index: {}]
  %s6 = inlined_call_operand.vmem [shape: f32[1,128], index: 6, kind: input, shape index: {}]
  %s7 = inlined_call_operand.vmem [shape: bf16[4,32,128], index: 7, kind: input, shape index: {}]
  %s8 = inlined_call_operand.vmem [shape: f32[1,128], index: 8, kind: input, shape index: {}]
  %s9 = inlined_call_operand.hbm [shape: f32[2,128], index: 9, kind: output, shape index: {0}]
  %s10 = inlined_call_operand.hbm [shape: f32[2,128], index: 10, kind: output, shape index: {1}]
  %11 = xla_tuple %s9, %s10
  %s12 = sld [smem:[#allocation0]]
  $region81: #{encoder_model_forward.1} parent=0
    _
  %s14 = ssub.s32 1, %s12
  %s15 = scalar_select 0, %s14, %s12
  $region1: #{encoder_model_forward.1} parent=0
    #allocation2 [shape = 'u8[1024]{0}', space=vmem, size = 0x400, scoped, tag = 'output window, operand 0, single buffered']
    #allocation3 [shape = 's32[2]{0}', space=sflag, size = 0x8, scoped, tag = 'scoped memory for encoder_model_forward.1']
    #allocation4 [shape = 'u8[1024]{0}', space=vmem, size = 0x400, scoped, tag = 'output window, operand 1, single buffered']
    #allocation5 [shape = 's32[1]{0}', space=sflag, size = 0x4, scoped, tag = 'scoped memory for encoder_model_forward.1']
    %16 = vsyncpa [#allocation3], 0
    %17 = vsyncpa [#allocation5], 0
    loop: start=0, step=1, limit=6
    $region2: #{encoder_model_forward.1} parent=1 // loop_pre_header
      _
    $region3: #{encoder_model_forward.1} parent=1 // loop_header
      %s19 = sphi 0, %s23
      %p20 = scmp.ge.s32.totalorder %s19, 6
      %s26 = sphi 0, %s38
      %s27 = sphi 0, %s34
      %s28 = sphi 0, %s26
      %s29 = sphi 0, %s27
      %s30 = sphi 0, %s28
      %s31 = sphi 0, %s29
      %s41 = sphi 0, %s43
      %s44 = sphi 0, %s41
      %s45 = sphi 0, %s44
      %s61 = sphi 0, %s45
      %s69 = sphi 0, %s71
      %s72 = sphi 0, %s69
      %s73 = sphi 0, %s72
      %s89 = sphi 0, %s73
      %s93 = sphi 0, %s93
      %s95 = sphi 0, %s93
      %s96 = sphi 0, %s95
      %s110 = sphi 0, %s96
      %s114 = sphi 0, %s114
      %s116 = sphi 0, %s114
      %s117 = sphi 0, %s116
      %s131 = sphi 0, %s117
      %s135 = sphi 0, %s135
      %s137 = sphi 0, %s135
      %s138 = sphi 0, %s137
      %s152 = sphi 0, %s138
      %s156 = sphi 0, %s156
      %s158 = sphi 0, %s156
      %s159 = sphi 0, %s158
      %s173 = sphi 0, %s159
      %s177 = sphi 0, %s177
      %s179 = sphi 0, %s177
      %s180 = sphi 0, %s179
      %s194 = sphi 0, %s180
      %s200 = sphi 0, %s202
      %s203 = sphi 0, %s200
      %s204 = sphi 0, %s203
      %s220 = sphi 0, %s204
      %s224 = sphi 0, %s224
      %s226 = sphi 0, %s224
      %s227 = sphi 0, %s226
      %s241 = sphi 0, %s227
      %s247 = sphi 0, %s249
      %s250 = sphi 0, %s247
      %s251 = sphi 0, %s250
      %s267 = sphi 0, %s251
      %s273 = sphi 0, %s275
      %s276 = sphi 0, %s273
      %s277 = sphi 0, %s276
      %s293 = sphi 0, %s277
    $region4: #{encoder_model_forward.1} parent=1 // loop_header_branch
      %22 = sbr.rel (%p20) target = $region8
    $region5: #{encoder_model_forward.1} parent=1 // loop_body
      %s24 = ssub.s32 %s19, 1
      %s25 = ssub.s32 %s19, 2
      %s32 = sadd.s32 1, %s27
      %p33 = scmp.ge.s32.totalorder %s32, 4
      %s34 = scalar_select %p33, 0, %s32
      %s35 = sadd.s32 1, %s26
      %s36 = scalar_select %p33, %s35, %s26
      %p37 = scmp.ge.s32.totalorder %s36, 1
      %s38 = scalar_select %p37, 0, %s36
      %s39 = ssub.s32 %s26, %s38
      %p40 = scmp.eq.s32.totalorder %s39, 0
      %s42 = sadd.s32 %s41, 1
      %s43 = scalar_select %p40, %s41, %s42
      %p46 = pneg %p40
      %p47 = scmp.eq.s32.totalorder %s19, 3
      %p48 = por %p46, %p47
      %p49 = scmp.ne.s32.totalorder %s41, %s44
      %p50 = scmp.eq.s32.totalorder %s19, 0
      %p51 = por %p49, %p50
      %p52 = scmp.ne.s32.totalorder %s41, %s44
      %p53 = scmp.eq.s32.totalorder %s24, 3
      %p54 = por %p52, %p53
      %p55 = scmp.ne.s32.totalorder %s44, %s45
      %p56 = scmp.eq.s32.totalorder %s24, 0
      %p57 = por %p55, %p56
      %p58 = scmp.ne.s32.totalorder %s44, %s45
      %p59 = scmp.eq.s32.totalorder %s25, 3
      %p60 = por %p58, %p59
      %p62 = scmp.ne.s32.totalorder %s45, %s61
      %p63 = scmp.eq.s32.totalorder %s25, 0
      %p64 = por %p62, %p63
      %s65 = ssub.s32 %s27, %s34
      %s66 = ssub.s32 %s26, %s38
      %s67 = sor.u32 %s65, %s66
      %p68 = scmp.eq.s32.totalorder %s67, 0
      %s70 = sadd.s32 %s69, 1
      %s71 = scalar_select %p68, %s69, %s70
      %p74 = pneg %p68
      %p75 = scmp.eq.s32.totalorder %s19, 3
      %p76 = por %p74, %p75
      %p77 = scmp.ne.s32.totalorder %s69, %s72
      %p78 = scmp.eq.s32.totalorder %s19, 0
      %p79 = por %p77, %p78
      %p80 = scmp.ne.s32.totalorder %s69, %s72
      %p81 = scmp.eq.s32.totalorder %s24, 3
      %p82 = por %p80, %p81
      %p83 = scmp.ne.s32.totalorder %s72, %s73
      %p84 = scmp.eq.s32.totalorder %s24, 0
      %p85 = por %p83, %p84
      %p86 = scmp.ne.s32.totalorder %s72, %s73
      %p87 = scmp.eq.s32.totalorder %s25, 3
      %p88 = por %p86, %p87
      %p90 = scmp.ne.s32.totalorder %s73, %s89
      %p91 = scmp.eq.s32.totalorder %s25, 0
      %p92 = por %p90, %p91
      %s94 = sadd.s32 %s93, 1
      %p97 = scmp.eq.s32.totalorder %s19, 3
      %p98 = scmp.ne.s32.totalorder %s93, %s95
      %p99 = scmp.eq.s32.totalorder %s19, 0
      %p100 = por %p98, %p99
      %p101 = scmp.ne.s32.totalorder %s93, %s95
      %p102 = scmp.eq.s32.totalorder %s24, 3
      %p103 = por %p101, %p102
      %p104 = scmp.ne.s32.totalorder %s95, %s96
      %p105 = scmp.eq.s32.totalorder %s24, 0
      %p106 = por %p104, %p105
      %p107 = scmp.ne.s32.totalorder %s95, %s96
      %p108 = scmp.eq.s32.totalorder %s25, 3
      %p109 = por %p107, %p108
      %p111 = scmp.ne.s32.totalorder %s96, %s110
      %p112 = scmp.eq.s32.totalorder %s25, 0
      %p113 = por %p111, %p112
      %s115 = sadd.s32 %s114, 1
      %p118 = scmp.eq.s32.totalorder %s19, 3
      %p119 = scmp.ne.s32.totalorder %s114, %s116
      %p120 = scmp.eq.s32.totalorder %s19, 0
      %p121 = por %p119, %p120
      %p122 = scmp.ne.s32.totalorder %s114, %s116
      %p123 = scmp.eq.s32.totalorder %s24, 3
      %p124 = por %p122, %p123
      %p125 = scmp.ne.s32.totalorder %s116, %s117
      %p126 = scmp.eq.s32.totalorder %s24, 0
      %p127 = por %p125, %p126
      %p128 = scmp.ne.s32.totalorder %s116, %s117
      %p129 = scmp.eq.s32.totalorder %s25, 3
      %p130 = por %p128, %p129
      %p132 = scmp.ne.s32.totalorder %s117, %s131
      %p133 = scmp.eq.s32.totalorder %s25, 0
      %p134 = por %p132, %p133
      %s136 = sadd.s32 %s135, 1
      %p139 = scmp.eq.s32.totalorder %s19, 3
      %p140 = scmp.ne.s32.totalorder %s135, %s137
      %p141 = scmp.eq.s32.totalorder %s19, 0
      %p142 = por %p140, %p141
      %p143 = scmp.ne.s32.totalorder %s135, %s137
      %p144 = scmp.eq.s32.totalorder %s24, 3
      %p145 = por %p143, %p144
      %p146 = scmp.ne.s32.totalorder %s137, %s138
      %p147 = scmp.eq.s32.totalorder %s24, 0
      %p148 = por %p146, %p147
      %p149 = scmp.ne.s32.totalorder %s137, %s138
      %p150 = scmp.eq.s32.totalorder %s25, 3
      %p151 = por %p149, %p150
      %p153 = scmp.ne.s32.totalorder %s138, %s152
      %p154 = scmp.eq.s32.totalorder %s25, 0
      %p155 = por %p153, %p154
      %s157 = sadd.s32 %s156, 1
      %p160 = scmp.eq.s32.totalorder %s19, 3
      %p161 = scmp.ne.s32.totalorder %s156, %s158
      %p162 = scmp.eq.s32.totalorder %s19, 0
      %p163 = por %p161, %p162
      %p164 = scmp.ne.s32.totalorder %s156, %s158
      %p165 = scmp.eq.s32.totalorder %s24, 3
      %p166 = por %p164, %p165
      %p167 = scmp.ne.s32.totalorder %s158, %s159
      %p168 = scmp.eq.s32.totalorder %s24, 0
      %p169 = por %p167, %p168
      %p170 = scmp.ne.s32.totalorder %s158, %s159
      %p171 = scmp.eq.s32.totalorder %s25, 3
      %p172 = por %p170, %p171
      %p174 = scmp.ne.s32.totalorder %s159, %s173
      %p175 = scmp.eq.s32.totalorder %s25, 0
      %p176 = por %p174, %p175
      %s178 = sadd.s32 %s177, 1
      %p181 = scmp.eq.s32.totalorder %s19, 3
      %p182 = scmp.ne.s32.totalorder %s177, %s179
      %p183 = scmp.eq.s32.totalorder %s19, 0
      %p184 = por %p182, %p183
      %p185 = scmp.ne.s32.totalorder %s177, %s179
      %p186 = scmp.eq.s32.totalorder %s24, 3
      %p187 = por %p185, %p186
      %p188 = scmp.ne.s32.totalorder %s179, %s180
      %p189 = scmp.eq.s32.totalorder %s24, 0
      %p190 = por %p188, %p189
      %p191 = scmp.ne.s32.totalorder %s179, %s180
      %p192 = scmp.eq.s32.totalorder %s25, 3
      %p193 = por %p191, %p192
      %p195 = scmp.ne.s32.totalorder %s180, %s194
      %p196 = scmp.eq.s32.totalorder %s25, 0
      %p197 = por %p195, %p196
      %s198 = ssub.s32 %s27, %s34
      %p199 = scmp.eq.s32.totalorder %s198, 0
      %s201 = sadd.s32 %s200, 1
      %s202 = scalar_select %p199, %s200, %s201
      %p205 = pneg %p199
      %p206 = scmp.eq.s32.totalorder %s19, 3
      %p207 = por %p205, %p206
      %p208 = scmp.ne.s32.totalorder %s200, %s203
      %p209 = scmp.eq.s32.totalorder %s19, 0
      %p210 = por %p208, %p209
      %p211 = scmp.ne.s32.totalorder %s200, %s203
      %p212 = scmp.eq.s32.totalorder %s24, 3
      %p213 = por %p211, %p212
      %p214 = scmp.ne.s32.totalorder %s203, %s204
      %p215 = scmp.eq.s32.totalorder %s24, 0
      %p216 = por %p214, %p215
      %p217 = scmp.ne.s32.totalorder %s203, %s204
      %p218 = scmp.eq.s32.totalorder %s25, 3
      %p219 = por %p217, %p218
      %p221 = scmp.ne.s32.totalorder %s204, %s220
      %p222 = scmp.eq.s32.totalorder %s25, 0
      %p223 = por %p221, %p222
      %s225 = sadd.s32 %s224, 1
      %p228 = scmp.eq.s32.totalorder %s19, 3
      %p229 = scmp.ne.s32.totalorder %s224, %s226
      %p230 = scmp.eq.s32.totalorder %s19, 0
      %p231 = por %p229, %p230
      %p232 = scmp.ne.s32.totalorder %s224, %s226
      %p233 = scmp.eq.s32.totalorder %s24, 3
      %p234 = por %p232, %p233
      %p235 = scmp.ne.s32.totalorder %s226, %s227
      %p236 = scmp.eq.s32.totalorder %s24, 0
      %p237 = por %p235, %p236
      %p238 = scmp.ne.s32.totalorder %s226, %s227
      %p239 = scmp.eq.s32.totalorder %s25, 3
      %p240 = por %p238, %p239
      %p242 = scmp.ne.s32.totalorder %s227, %s241
      %p243 = scmp.eq.s32.totalorder %s25, 0
      %p244 = por %p242, %p243
      %s245 = ssub.s32 %s26, %s38
      %p246 = scmp.eq.s32.totalorder %s245, 0
      %s248 = sadd.s32 %s247, 1
      %s249 = scalar_select %p246, %s247, %s248
      %p252 = pneg %p246
      %p253 = scmp.eq.s32.totalorder %s19, 3
      %p254 = por %p252, %p253
      %p255 = scmp.ne.s32.totalorder %s247, %s250
      %p256 = scmp.eq.s32.totalorder %s19, 0
      %p257 = por %p255, %p256
      %p258 = scmp.ne.s32.totalorder %s247, %s250
      %p259 = scmp.eq.s32.totalorder %s24, 3
      %p260 = por %p258, %p259
      %p261 = scmp.ne.s32.totalorder %s250, %s251
      %p262 = scmp.eq.s32.totalorder %s24, 0
      %p263 = por %p261, %p262
      %p264 = scmp.ne.s32.totalorder %s250, %s251
      %p265 = scmp.eq.s32.totalorder %s25, 3
      %p266 = por %p264, %p265
      %p268 = scmp.ne.s32.totalorder %s251, %s267
      %p269 = scmp.eq.s32.totalorder %s25, 0
      %p270 = por %p268, %p269
      %s271 = ssub.s32 %s26, %s38
      %p272 = scmp.eq.s32.totalorder %s271, 0
      %s274 = sadd.s32 %s273, 1
      %s275 = scalar_select %p272, %s273, %s274
      %p278 = pneg %p272
      %p279 = scmp.eq.s32.totalorder %s19, 3
      %p280 = por %p278, %p279
      %p281 = scmp.ne.s32.totalorder %s273, %s276
      %p282 = scmp.eq.s32.totalorder %s19, 0
      %p283 = por %p281, %p282
      %p284 = scmp.ne.s32.totalorder %s273, %s276
      %p285 = scmp.eq.s32.totalorder %s24, 3
      %p286 = por %p284, %p285
      %p287 = scmp.ne.s32.totalorder %s276, %s277
      %p288 = scmp.eq.s32.totalorder %s24, 0
      %p289 = por %p287, %p288
      %p290 = scmp.ne.s32.totalorder %s276, %s277
      %p291 = scmp.eq.s32.totalorder %s25, 3
      %p292 = por %p290, %p291
      %p294 = scmp.ne.s32.totalorder %s277, %s293
      %p295 = scmp.eq.s32.totalorder %s25, 0
      %p296 = por %p294, %p295
      %p297 = scmp.le.s32.totalorder 1, %s19
      %p298 = scmp.lt.s32.totalorder %s19, 5
      %p299 = pnand %p297, %p298
      %p300 = pneg %p299
      // Predicated region
      $region9: #{encoder_model_forward.1} parent=5 // pred_check
        _
      $region10: #{encoder_model_forward.1} parent=5 // pred_check_branch
        %302 = sbr.rel (%p299) target = $region12
      $region11: #{encoder_model_forward.1} parent=5 // pred_region
        %s303 = ssub.s32 %s19, 1
        // Predicated region
        $region13: #{encoder_model_forward.1} parent=11 // pred_check
          %p304 = pneg %p57
        $region14: #{encoder_model_forward.1} parent=11 // pred_check_branch
          %306 = sbr.rel (%p304) target = $region16
        $region15: #{encoder_model_forward.1} parent=11 // pred_region
          %p307 = scmp.lt.s32.totalorder %s28, 0
          %s308 = scalar_select %p307, %s28, 0
          %s309 = smul.addr %s308, 8
          %s310 = scalar_lea.vmem %s0, %s309
        $region16: #{encoder_model_forward.1} parent=11 // pred_fallthru
          _
        // Predicated region
        $region17: #{encoder_model_forward.1} parent=11 // pred_check
          %p311 = pneg %p106
        $region18: #{encoder_model_forward.1} parent=11 // pred_check_branch
          %313 = sbr.rel (%p311) target = $region20
        $region19: #{encoder_model_forward.1} parent=11 // pred_region
          _
        $region20: #{encoder_model_forward.1} parent=11 // pred_fallthru
          _
        // Predicated region
        $region21: #{encoder_model_forward.1} parent=11 // pred_check
          %p314 = pneg %p127
        $region22: #{encoder_model_forward.1} parent=11 // pred_check_branch
          %316 = sbr.rel (%p314) target = $region24
        $region23: #{encoder_model_forward.1} parent=11 // pred_region
          _
        $region24: #{encoder_model_forward.1} parent=11 // pred_fallthru
          _
        // Predicated region
        $region25: #{encoder_model_forward.1} parent=11 // pred_check
          %p317 = pneg %p148
        $region26: #{encoder_model_forward.1} parent=11 // pred_check_branch
          %319 = sbr.rel (%p317) target = $region28
        $region27: #{encoder_model_forward.1} parent=11 // pred_region
          _
        $region28: #{encoder_model_forward.1} parent=11 // pred_fallthru
          _
        // Predicated region
        $region29: #{encoder_model_forward.1} parent=11 // pred_check
          %p320 = pneg %p169
        $region30: #{encoder_model_forward.1} parent=11 // pred_check_branch
          %322 = sbr.rel (%p320) target = $region32
        $region31: #{encoder_model_forward.1} parent=11 // pred_region
          _
        $region32: #{encoder_model_forward.1} parent=11 // pred_fallthru
          _
        // Predicated region
        $region33: #{encoder_model_forward.1} parent=11 // pred_check
          %p323 = pneg %p190
        $region34: #{encoder_model_forward.1} parent=11 // pred_check_branch
          %325 = sbr.rel (%p323) target = $region36
        $region35: #{encoder_model_forward.1} parent=11 // pred_region
          _
        $region36: #{encoder_model_forward.1} parent=11 // pred_fallthru
          _
        // Predicated region
        $region37: #{encoder_model_forward.1} parent=11 // pred_check
          %p326 = pneg %p237
        $region38: #{encoder_model_forward.1} parent=11 // pred_check_branch
          %328 = sbr.rel (%p326) target = $region40
        $region39: #{encoder_model_forward.1} parent=11 // pred_region
          _
        $region40: #{encoder_model_forward.1} parent=11 // pred_fallthru
          _
      $region12: #{encoder_model_forward.1} parent=5 // pred_fallthru
        _
      %p329 = scmp.lt.s32.totalorder %s19, 4
      // Predicated region
      $region41: #{encoder_model_forward.1} parent=5 // pred_check
        %p330 = pneg %p329
      $region42: #{encoder_model_forward.1} parent=5 // pred_check_branch
        %332 = sbr.rel (%p330) target = $region44
      $region43: #{encoder_model_forward.1} parent=5 // pred_region
        // Predicated region
        $region45: #{encoder_model_forward.1} parent=43 // pred_check
          %p333 = pneg %p79
        $region46: #{encoder_model_forward.1} parent=43 // pred_check_branch
          %335 = sbr.rel (%p333) target = $region48
        $region47: #{encoder_model_forward.1} parent=43 // pred_region
          %p336 = scmp.lt.s32.totalorder %s27, 3
          %s337 = scalar_select %p336, %s27, 3
          %p338 = scmp.lt.s32.totalorder %s26, 0
          %s339 = scalar_select %p338, %s26, 0
          %s340 = smul.addr %s339, 2
          %s341 = smul.addr %s337, 2
          %s342 = sadd.s32 %s340, %s341
          %s343 = scalar_lea.vmem %s1, %s342
        $region48: #{encoder_model_forward.1} parent=43 // pred_fallthru
          _
        // Predicated region
        $region49: #{encoder_model_forward.1} parent=43 // pred_check
          %p344 = pneg %p210
        $region50: #{encoder_model_forward.1} parent=43 // pred_check_branch
          %346 = sbr.rel (%p344) target = $region52
        $region51: #{encoder_model_forward.1} parent=43 // pred_region
          %p347 = scmp.lt.s32.totalorder %s27, 3
          %s348 = scalar_select %p347, %s27, 3
          %s349 = smul.addr %s348, 4
          %s350 = smul.addr %s349, 4
          %s351 = scalar_lea.vmem %s7, %s350
        $region52: #{encoder_model_forward.1} parent=43 // pred_fallthru
          _
      $region44: #{encoder_model_forward.1} parent=5 // pred_fallthru
        _
      %p352 = scmp.le.s32.totalorder 1, %s19
      %p353 = scmp.lt.s32.totalorder %s19, 5
      %p354 = pnand %p352, %p353
      %p355 = pneg %p354
      // Predicated region
      $region53: #{encoder_model_forward.1} parent=5 // pred_check
        _
      $region54: #{encoder_model_forward.1} parent=5 // pred_check_branch
        %357 = sbr.rel (%p354) target = $region56
      $region55: #{encoder_model_forward.1} parent=5 // pred_region
        %s358 = ssub.s32 %s19, 1
        %p359 = scmp.lt.s32.totalorder %s28, 0
        %s360 = scalar_select %p359, %s28, 0
        %s361 = smul.addr %s360, 8
        %s362 = scalar_lea.vmem %s0, %s361
        %p363 = pneg %p57
        %p364 = pneg %p54
        %p365 = scmp.lt.s32.totalorder %s29, 3
        %s366 = scalar_select %p365, %s29, 3
        %p367 = scmp.lt.s32.totalorder %s28, 0
        %s368 = scalar_select %p367, %s28, 0
        %s369 = smul.addr %s368, 2
        %s370 = smul.addr %s366, 2
        %s371 = sadd.s32 %s369, %s370
        %s372 = scalar_lea.vmem %s1, %s371
        %p373 = pneg %p85
        %p374 = pneg %p82
        %p375 = pneg %p106
        %p376 = pneg %p103
        %p377 = pneg %p127
        %p378 = pneg %p124
        %p379 = pneg %p148
        %p380 = pneg %p145
        %p381 = pneg %p169
        %p382 = pneg %p166
        %p383 = pneg %p190
        %p384 = pneg %p187
        %p385 = scmp.lt.s32.totalorder %s29, 3
        %s386 = scalar_select %p385, %s29, 3
        %s387 = smul.addr %s386, 4
        %s388 = smul.addr %s387, 4
        %s389 = scalar_lea.vmem %s7, %s388
        %p390 = pneg %p216
        %p391 = pneg %p213
        %p392 = pneg %p237
        %p393 = pneg %p234
        %p394 = pneg %p263
        %p395 = pneg %p260
        %p396 = pneg %p289
        %p397 = pneg %p286
        %p398 = scmp.lt.s32.totalorder %s28, 0
        %s399 = scalar_select %p398, %s28, 0
        %s400 = smul.addr %s399, 8
        %s401 = scalar_lea.vmem %s0, %s400
        %p402 = scmp.lt.s32.totalorder %s29, 3
        %s403 = scalar_select %p402, %s29, 3
        %p404 = scmp.lt.s32.totalorder %s28, 0
        %s405 = scalar_select %p404, %s28, 0
        %s406 = smul.addr %s405, 2
        %s407 = smul.addr %s403, 2
        %s408 = sadd.s32 %s406, %s407
        %s409 = scalar_lea.vmem %s1, %s408
        %p410 = scmp.lt.s32.totalorder %s29, 3
        %s411 = scalar_select %p410, %s29, 3
        %s412 = smul.addr %s411, 4
        %s413 = smul.addr %s412, 4
        %s414 = scalar_lea.vmem %s7, %s413
        %p416 = scmp.eq.s32.totalorder %s29, 0
        // Predicated region
        $region57: #{encoder_model_forward.1} parent=55 // pred_check
          %p417 = pneg %p416
        $region58: #{encoder_model_forward.1} parent=55 // pred_check_branch
          %419 = sbr.rel (%p417) target = $region60
        $region59: #{encoder_model_forward.1} parent=55 // pred_region
          %v420 = vld [vmem:[%s8] sm:$0x1]
          %v422 = vlaneseq
          %v423 = vshrl.u32 %v422, 7
          %v424 = vsub.s32 0, %v423
          %v425 = vrot.slane %v420, %v424
          %v427 = vadd.f32 %v425, 0.0
          %428 = vst [vmem:[#allocation4] sm:$0x3] %v427
          %v429 = vld [vmem:[%s401] sm:$0xff]
          %v430 = vld [vmem:[%s2] sm:$0xf]
          %v431 = vld [vmem:[%s2 + $0x4] sm:$0xf]
          %v432 = vld [vmem:[%s2 + $0x8] sm:$0xf]
          %v433 = vld [vmem:[%s2 + $0xc] sm:$0xf]
          %v434 = vld [vmem:[%s2 + $0x10] sm:$0xf]
          %v435 = vld [vmem:[%s2 + $0x14] sm:$0xf]
          %v436 = vld [vmem:[%s2 + $0x18] sm:$0xf]
          %v437 = vld [vmem:[%s2 + $0x1c] sm:$0xf]
          %v438 = vld [vmem:[%s2 + $0x20] sm:$0xf]
          %v439 = vld [vmem:[%s2 + $0x24] sm:$0xf]
          %v440 = vld [vmem:[%s2 + $0x28] sm:$0xf]
          %v441 = vld [vmem:[%s2 + $0x2c] sm:$0xf]
          %v442 = vld [vmem:[%s2 + $0x30] sm:$0xf]
          %v443 = vld [vmem:[%s2 + $0x34] sm:$0xf]
          %v444 = vld [vmem:[%s2 + $0x38] sm:$0xf]
          %v445 = vld [vmem:[%s2 + $0x3c] sm:$0xf]
          %v446 = vld [vmem:[%s2 + $0x40] sm:$0xf]
          %v447 = vld [vmem:[%s2 + $0x44] sm:$0xf]
          %v448 = vld [vmem:[%s2 + $0x48] sm:$0xf]
          %v449 = vld [vmem:[%s2 + $0x4c] sm:$0xf]
          %v450 = vld [vmem:[%s2 + $0x50] sm:$0xf]
          %v451 = vld [vmem:[%s2 + $0x54] sm:$0xf]
          %v452 = vld [vmem:[%s2 + $0x58] sm:$0xf]
          %v453 = vld [vmem:[%s2 + $0x5c] sm:$0xf]
          %v454 = vld [vmem:[%s2 + $0x60] sm:$0xf]
          %v455 = vld [vmem:[%s2 + $0x64] sm:$0xf]
          %v456 = vld [vmem:[%s2 + $0x68] sm:$0xf]
          %v457 = vld [vmem:[%s2 + $0x6c] sm:$0xf]
          %v458 = vld [vmem:[%s2 + $0x70] sm:$0xf]
          %v459 = vld [vmem:[%s2 + $0x74] sm:$0xf]
          %v460 = vld [vmem:[%s2 + $0x78] sm:$0xf]
          %v461 = vld [vmem:[%s2 + $0x7c] sm:$0xf]
          %v462 = vld [vmem:[%s2 + $0x80] sm:$0xf]
          %v463 = vld [vmem:[%s2 + $0x84] sm:$0xf]
          %v464 = vld [vmem:[%s2 + $0x88] sm:$0xf]
          %v465 = vld [vmem:[%s2 + $0x8c] sm:$0xf]
          %v466 = vld [vmem:[%s2 + $0x90] sm:$0xf]
          %v467 = vld [vmem:[%s2 + $0x94] sm:$0xf]
          %v468 = vld [vmem:[%s2 + $0x98] sm:$0xf]
          %v469 = vld [vmem:[%s2 + $0x9c] sm:$0xf]
          %v470 = vld [vmem:[%s2 + $0xa0] sm:$0xf]
          %v471 = vld [vmem:[%s2 + $0xa4] sm:$0xf]
          %v472 = vld [vmem:[%s2 + $0xa8] sm:$0xf]
          %v473 = vld [vmem:[%s2 + $0xac] sm:$0xf]
          %v474 = vld [vmem:[%s2 + $0xb0] sm:$0xf]
          %v475 = vld [vmem:[%s2 + $0xb4] sm:$0xf]
          %v476 = vld [vmem:[%s2 + $0xb8] sm:$0xf]
          %v477 = vld [vmem:[%s2 + $0xbc] sm:$0xf]
          %v478 = vld [vmem:[%s2 + $0xc0] sm:$0xf]
          %v479 = vld [vmem:[%s2 + $0xc4] sm:$0xf]
          %v480 = vld [vmem:[%s2 + $0xc8] sm:$0xf]
          %v481 = vld [vmem:[%s2 + $0xcc] sm:$0xf]
          %v482 = vld [vmem:[%s2 + $0xd0] sm:$0xf]
          %v483 = vld [vmem:[%s2 + $0xd4] sm:$0xf]
          %v484 = vld [vmem:[%s2 + $0xd8] sm:$0xf]
          %v485 = vld [vmem:[%s2 + $0xdc] sm:$0xf]
          %v486 = vld [vmem:[%s2 + $0xe0] sm:$0xf]
          %v487 = vld [vmem:[%s2 + $0xe4] sm:$0xf]
          %v488 = vld [vmem:[%s2 + $0xe8] sm:$0xf]
          %v489 = vld [vmem:[%s2 + $0xec] sm:$0xf]
          %v490 = vld [vmem:[%s2 + $0xf0] sm:$0xf]
          %v491 = vld [vmem:[%s2 + $0xf4] sm:$0xf]
          %v492 = vld [vmem:[%s2 + $0xf8] sm:$0xf]
          %v493 = vld [vmem:[%s2 + $0xfc] sm:$0xf]
          %v494 = vld [vmem:[%s2 + $0x100] sm:$0xf]
          %v495 = vld [vmem:[%s2 + $0x104] sm:$0xf]
          %v496 = vld [vmem:[%s2 + $0x108] sm:$0xf]
          %v497 = vld [vmem:[%s2 + $0x10c] sm:$0xf]
          %v498 = vld [vmem:[%s2 + $0x110] sm:$0xf]
          %v499 = vld [vmem:[%s2 + $0x114] sm:$0xf]
          %v500 = vld [vmem:[%s2 + $0x118] sm:$0xf]
          %v501 = vld [vmem:[%s2 + $0x11c] sm:$0xf]
          %v502 = vld [vmem:[%s2 + $0x120] sm:$0xf]
          %v503 = vld [vmem:[%s2 + $0x124] sm:$0xf]
          %v504 = vld [vmem:[%s2 + $0x128] sm:$0xf]
          %v505 = vld [vmem:[%s2 + $0x12c] sm:$0xf]
          %v506 = vld [vmem:[%s2 + $0x130] sm:$0xf]
          %v507 = vld [vmem:[%s2 + $0x134] sm:$0xf]
          %v508 = vld [vmem:[%s2 + $0x138] sm:$0xf]
          %v509 = vld [vmem:[%s2 + $0x13c] sm:$0xf]
          %v510 = vld [vmem:[%s2 + $0x140] sm:$0xf]
          %v511 = vld [vmem:[%s2 + $0x144] sm:$0xf]
          %v512 = vld [vmem:[%s2 + $0x148] sm:$0xf]
          %v513 = vld [vmem:[%s2 + $0x14c] sm:$0xf]
          %v514 = vld [vmem:[%s2 + $0x150] sm:$0xf]
          %v515 = vld [vmem:[%s2 + $0x154] sm:$0xf]
          %v516 = vld [vmem:[%s2 + $0x158] sm:$0xf]
          %v517 = vld [vmem:[%s2 + $0x15c] sm:$0xf]
          %v518 = vld [vmem:[%s2 + $0x160] sm:$0xf]
          %v519 = vld [vmem:[%s2 + $0x164] sm:$0xf]
          %v520 = vld [vmem:[%s2 + $0x168] sm:$0xf]
          %v521 = vld [vmem:[%s2 + $0x16c] sm:$0xf]
          %v522 = vld [vmem:[%s2 + $0x170] sm:$0xf]
          %v523 = vld [vmem:[%s2 + $0x174] sm:$0xf]
          %v524 = vld [vmem:[%s2 + $0x178] sm:$0xf]
          %v525 = vld [vmem:[%s2 + $0x17c] sm:$0xf]
          %v526 = vld [vmem:[%s2 + $0x180] sm:$0xf]
          %v527 = vld [vmem:[%s2 + $0x184] sm:$0xf]
          %v528 = vld [vmem:[%s2 + $0x188] sm:$0xf]
          %v529 = vld [vmem:[%s2 + $0x18c] sm:$0xf]
          %v530 = vld [vmem:[%s2 + $0x190] sm:$0xf]
          %v531 = vld [vmem:[%s2 + $0x194] sm:$0xf]
          %v532 = vld [vmem:[%s2 + $0x198] sm:$0xf]
          %v533 = vld [vmem:[%s2 + $0x19c] sm:$0xf]
          %v534 = vld [vmem:[%s2 + $0x1a0] sm:$0xf]
          %v535 = vld [vmem:[%s2 + $0x1a4] sm:$0xf]
          %v536 = vld [vmem:[%s2 + $0x1a8] sm:$0xf]
          %v537 = vld [vmem:[%s2 + $0x1ac] sm:$0xf]
          %v538 = vld [vmem:[%s2 + $0x1b0] sm:$0xf]
          %v539 = vld [vmem:[%s2 + $0x1b4] sm:$0xf]
          %v540 = vld [vmem:[%s2 + $0x1b8] sm:$0xf]
          %v541 = vld [vmem:[%s2 + $0x1bc] sm:$0xf]
          %v542 = vld [vmem:[%s2 + $0x1c0] sm:$0xf]
          %v543 = vld [vmem:[%s2 + $0x1c4] sm:$0xf]
          %v544 = vld [vmem:[%s2 + $0x1c8] sm:$0xf]
          %v545 = vld [vmem:[%s2 + $0x1cc] sm:$0xf]
          %v546 = vld [vmem:[%s2 + $0x1d0] sm:$0xf]
          %v547 = vld [vmem:[%s2 + $0x1d4] sm:$0xf]
          %v548 = vld [vmem:[%s2 + $0x1d8] sm:$0xf]
          %v549 = vld [vmem:[%s2 + $0x1dc] sm:$0xf]
          %v550 = vld [vmem:[%s2 + $0x1e0] sm:$0xf]
          %v551 = vld [vmem:[%s2 + $0x1e4] sm:$0xf]
          %v552 = vld [vmem:[%s2 + $0x1e8] sm:$0xf]
          %v553 = vld [vmem:[%s2 + $0x1ec] sm:$0xf]
          %v554 = vld [vmem:[%s2 + $0x1f0] sm:$0xf]
          %v555 = vld [vmem:[%s2 + $0x1f4] sm:$0xf]
          %v556 = vld [vmem:[%s2 + $0x1f8] sm:$0xf]
          %v557 = vld [vmem:[%s2 + $0x1fc] sm:$0xf]
          %v558 = vld [vmem:[%s4] sm:$0x1]
          %v560 = vlaneseq
          %v561 = vshrl.u32 %v560, 7
          %v562 = vsub.s32 0, %v561
          %v563 = vrot.slane %v558, %v562
          %v566 = vcombine.high %v429, %v429
          %v568 = vunpack.c.l.s4 1966171168
          %v569 = vunpack.c.0.s8 %v568
          %v570 = vlaneseq
          %v571 = vshrl.u32 %v570, 7
          %v572 = vsub.s32 %v569, %v571
          %v573 = vrot.slane %v429, %v572
          %v575 = vunpack.c.l.s4 1966171168
          %v576 = vunpack.c.0.s8 %v575
          %v577 = vlaneseq
          %v578 = vshrl.u32 %v577, 7
          %v579 = vsub.s32 %v576, %v578
          %v580 = vrot.slane %v566, %v579
          %v581 = vcombine.high %v573, %v573
          %v582 = vcombine.high %v580, %v580
          %v584 = vunpack.c.l.s4 1966171168
          %v585 = vunpack.c.0.s8 %v584
          %v586 = vlaneseq
          %v587 = vshrl.u32 %v586, 7
          %v588 = vsub.s32 %v585, %v587
          %v589 = vrot.slane %v573, %v588
          %v591 = vunpack.c.l.s4 1966171168
          %v592 = vunpack.c.0.s8 %v591
          %v593 = vlaneseq
          %v594 = vshrl.u32 %v593, 7
          %v595 = vsub.s32 %v592, %v594
          %v596 = vrot.slane %v580, %v595
          %v598 = vunpack.c.l.s4 1966171168
          %v599 = vunpack.c.0.s8 %v598
          %v600 = vlaneseq
          %v601 = vshrl.u32 %v600, 7
          %v602 = vsub.s32 %v599, %v601
          %v603 = vrot.slane %v581, %v602
          %v605 = vunpack.c.l.s4 1966171168
          %v606 = vunpack.c.0.s8 %v605
          %v607 = vlaneseq
          %v608 = vshrl.u32 %v607, 7
          %v609 = vsub.s32 %v606, %v608
          %v610 = vrot.slane %v582, %v609
          %v611 = vcombine.high %v589, %v589
          %v612 = vcombine.high %v596, %v596
          %v613 = vcombine.high %v603, %v603
          %v614 = vcombine.high %v610, %v610
          %v751 = vunpack.c.l.b16 %v430
          %v752 = vunpack.c.l.b16 %v431
          %v753 = vunpack.c.l.b16 %v432
          %v754 = vunpack.c.l.b16 %v433
          %v755 = vunpack.c.l.b16 %v434
          %v756 = vunpack.c.l.b16 %v435
          %v757 = vunpack.c.l.b16 %v436
          %v758 = vunpack.c.l.b16 %v437
          %v759 = vunpack.c.l.b16 %v438
          %v760 = vunpack.c.l.b16 %v439
          %v761 = vunpack.c.l.b16 %v440
          %v762 = vunpack.c.l.b16 %v441
          %v763 = vunpack.c.l.b16 %v442
          %v764 = vunpack.c.l.b16 %v443
          %v765 = vunpack.c.l.b16 %v444
          %v766 = vunpack.c.l.b16 %v445
          %v767 = vunpack.c.l.b16 %v446
          %v768 = vunpack.c.l.b16 %v447
          %v769 = vunpack.c.l.b16 %v448
          %v770 = vunpack.c.l.b16 %v449
          %v771 = vunpack.c.l.b16 %v450
          %v772 = vunpack.c.l.b16 %v451
          %v773 = vunpack.c.l.b16 %v452
          %v774 = vunpack.c.l.b16 %v453
          %v775 = vunpack.c.l.b16 %v454
          %v776 = vunpack.c.l.b16 %v455
          %v777 = vunpack.c.l.b16 %v456
          %v778 = vunpack.c.l.b16 %v457
          %v779 = vunpack.c.l.b16 %v458
          %v780 = vunpack.c.l.b16 %v459
          %v781 = vunpack.c.l.b16 %v460
          %v782 = vunpack.c.l.b16 %v461
          %v783 = vunpack.c.l.b16 %v462
          %v784 = vunpack.c.l.b16 %v463
          %v785 = vunpack.c.l.b16 %v464
          %v786 = vunpack.c.l.b16 %v465
          %v787 = vunpack.c.l.b16 %v466
          %v788 = vunpack.c.l.b16 %v467
          %v789 = vunpack.c.l.b16 %v468
          %v790 = vunpack.c.l.b16 %v469
          %v791 = vunpack.c.l.b16 %v470
          %v792 = vunpack.c.l.b16 %v471
          %v793 = vunpack.c.l.b16 %v472
          %v794 = vunpack.c.l.b16 %v473
          %v795 = vunpack.c.l.b16 %v474
          %v796 = vunpack.c.l.b16 %v475
          %v797 = vunpack.c.l.b16 %v476
          %v798 = vunpack.c.l.b16 %v477
          %v799 = vunpack.c.l.b16 %v478
          %v800 = vunpack.c.l.b16 %v479
          %v801 = vunpack.c.l.b16 %v480
          %v802 = vunpack.c.l.b16 %v481
          %v803 = vunpack.c.l.b16 %v482
          %v804 = vunpack.c.l.b16 %v483
          %v805 = vunpack.c.l.b16 %v484
          %v806 = vunpack.c.l.b16 %v485
          %v807 = vunpack.c.l.b16 %v486
          %v808 = vunpack.c.l.b16 %v487
          %v809 = vunpack.c.l.b16 %v488
          %v810 = vunpack.c.l.b16 %v489
          %v811 = vunpack.c.l.b16 %v490
          %v812 = vunpack.c.l.b16 %v491
          %v813 = vunpack.c.l.b16 %v492
          %v814 = vunpack.c.l.b16 %v493
          %v815 = vunpack.c.l.b16 %v494
          %v816 = vunpack.c.l.b16 %v495
          %v817 = vunpack.c.l.b16 %v496
          %v818 = vunpack.c.l.b16 %v497
          %v819 = vunpack.c.l.b16 %v498
          %v820 = vunpack.c.l.b16 %v499
          %v821 = vunpack.c.l.b16 %v500
          %v822 = vunpack.c.l.b16 %v501
          %v823 = vunpack.c.l.b16 %v502
          %v824 = vunpack.c.l.b16 %v503
          %v825 = vunpack.c.l.b16 %v504
          %v826 = vunpack.c.l.b16 %v505
          %v827 = vunpack.c.l.b16 %v506
          %v828 = vunpack.c.l.b16 %v507
          %v829 = vunpack.c.l.b16 %v508
          %v830 = vunpack.c.l.b16 %v509
          %v831 = vunpack.c.l.b16 %v510
          %v832 = vunpack.c.l.b16 %v511
          %v833 = vunpack.c.l.b16 %v512
          %v834 = vunpack.c.l.b16 %v513
          %v835 = vunpack.c.l.b16 %v514
          %v836 = vunpack.c.l.b16 %v515
          %v837 = vunpack.c.l.b16 %v516
          %v838 = vunpack.c.l.b16 %v517
          %v839 = vunpack.c.l.b16 %v518
          %v840 = vunpack.c.l.b16 %v519
          %v841 = vunpack.c.l.b16 %v520
          %v842 = vunpack.c.l.b16 %v521
          %v843 = vunpack.c.l.b16 %v522
          %v844 = vunpack.c.l.b16 %v523
          %v845 = vunpack.c.l.b16 %v524
          %v846 = vunpack.c.l.b16 %v525
          %v847 = vunpack.c.l.b16 %v526
          %v848 = vunpack.c.l.b16 %v527
          %v849 = vunpack.c.l.b16 %v528
          %v850 = vunpack.c.l.b16 %v529
          %v851 = vunpack.c.l.b16 %v530
          %v852 = vunpack.c.l.b16 %v531
          %v853 = vunpack.c.l.b16 %v532
          %v854 = vunpack.c.l.b16 %v533
          %v855 = vunpack.c.l.b16 %v534
          %v856 = vunpack.c.l.b16 %v535
          %v857 = vunpack.c.l.b16 %v536
          %v858 = vunpack.c.l.b16 %v537
          %v859 = vunpack.c.l.b16 %v538
          %v860 = vunpack.c.l.b16 %v539
          %v861 = vunpack.c.l.b16 %v540
          %v862 = vunpack.c.l.b16 %v541
          %v863 = vunpack.c.l.b16 %v542
          %v864 = vunpack.c.l.b16 %v543
          %v865 = vunpack.c.l.b16 %v544
          %v866 = vunpack.c.l.b16 %v545
          %v867 = vunpack.c.l.b16 %v546
          %v868 = vunpack.c.l.b16 %v547
          %v869 = vunpack.c.l.b16 %v548
          %v870 = vunpack.c.l.b16 %v549
          %v871 = vunpack.c.l.b16 %v550
          %v872 = vunpack.c.l.b16 %v551
          %v873 = vunpack.c.l.b16 %v552
          %v874 = vunpack.c.l.b16 %v553
          %v875 = vunpack.c.l.b16 %v554
          %v876 = vunpack.c.l.b16 %v555
          %v877 = vunpack.c.l.b16 %v556
          %v878 = vunpack.c.l.b16 %v557
          %v879 = vpack.c.b16 %v752, %v751
          %v880 = vpack.c.b16 %v754, %v753
          %v881 = vpack.c.b16 %v756, %v755
          %v882 = vpack.c.b16 %v758, %v757
          %v883 = vpack.c.b16 %v760, %v759
          %v884 = vpack.c.b16 %v762, %v761
          %v885 = vpack.c.b16 %v764, %v763
          %v886 = vpack.c.b16 %v766, %v765
          %v887 = vpack.c.b16 %v768, %v767
          %v888 = vpack.c.b16 %v770, %v769
          %v889 = vpack.c.b16 %v772, %v771
          %v890 = vpack.c.b16 %v774, %v773
          %v891 = vpack.c.b16 %v776, %v775
          %v892 = vpack.c.b16 %v778, %v777
          %v893 = vpack.c.b16 %v780, %v779
          %v894 = vpack.c.b16 %v782, %v781
          %v895 = vpack.c.b16 %v784, %v783
          %v896 = vpack.c.b16 %v786, %v785
          %v897 = vpack.c.b16 %v788, %v787
          %v898 = vpack.c.b16 %v790, %v789
          %v899 = vpack.c.b16 %v792, %v791
          %v900 = vpack.c.b16 %v794, %v793
          %v901 = vpack.c.b16 %v796, %v795
          %v902 = vpack.c.b16 %v798, %v797
          %v903 = vpack.c.b16 %v800, %v799
          %v904 = vpack.c.b16 %v802, %v801
          %v905 = vpack.c.b16 %v804, %v803
          %v906 = vpack.c.b16 %v806, %v805
          %v907 = vpack.c.b16 %v808, %v807
          %v908 = vpack.c.b16 %v810, %v809
          %v909 = vpack.c.b16 %v812, %v811
          %v910 = vpack.c.b16 %v814, %v813
          %v911 = vpack.c.b16 %v816, %v815
          %v912 = vpack.c.b16 %v818, %v817
          %v913 = vpack.c.b16 %v820, %v819
          %v914 = vpack.c.b16 %v822, %v821
          %v915 = vpack.c.b16 %v824, %v823
          %v916 = vpack.c.b16 %v826, %v825
          %v917 = vpack.c.b16 %v828, %v827
          %v918 = vpack.c.b16 %v830, %v829
          %v919 = vpack.c.b16 %v832, %v831
          %v920 = vpack.c.b16 %v834, %v833
          %v921 = vpack.c.b16 %v836, %v835
          %v922 = vpack.c.b16 %v838, %v837
          %v923 = vpack.c.b16 %v840, %v839
          %v924 = vpack.c.b16 %v842, %v841
          %v925 = vpack.c.b16 %v844, %v843
          %v926 = vpack.c.b16 %v846, %v845
          %v927 = vpack.c.b16 %v848, %v847
          %v928 = vpack.c.b16 %v850, %v849
          %v929 = vpack.c.b16 %v852, %v851
          %v930 = vpack.c.b16 %v854, %v853
          %v931 = vpack.c.b16 %v856, %v855
          %v932 = vpack.c.b16 %v858, %v857
          %v933 = vpack.c.b16 %v860, %v859
          %v934 = vpack.c.b16 %v862, %v861
          %v935 = vpack.c.b16 %v864, %v863
          %v936 = vpack.c.b16 %v866, %v865
          %v937 = vpack.c.b16 %v868, %v867
          %v938 = vpack.c.b16 %v870, %v869
          %v939 = vpack.c.b16 %v872, %v871
          %v940 = vpack.c.b16 %v874, %v873
          %v941 = vpack.c.b16 %v876, %v875
          %v942 = vpack.c.b16 %v878, %v877
          %1007 = vmatprep.subr.bf16.mxu0 0
          %1008 = vmatpush1.bf16.msra.mxu0 %v879
          %1009 = vmatprep.subr.bf16.mxu0 0
          %1010 = vmatpush1.bf16.msra.mxu0 %v880
          %1011 = vmatprep.subr.bf16.mxu0 0
          %1012 = vmatpush1.bf16.msra.mxu0 %v881
          %1013 = vmatprep.subr.bf16.mxu0 0
          %1014 = vmatpush1.bf16.msra.mxu0 %v882
          %1015 = vmatprep.subr.bf16.mxu0 0
          %1016 = vmatpush1.bf16.msra.mxu0 %v883
          %1017 = vmatprep.subr.bf16.mxu0 0
          %1018 = vmatpush1.bf16.msra.mxu0 %v884
          %1019 = vmatprep.subr.bf16.mxu0 0
          %1020 = vmatpush1.bf16.msra.mxu0 %v885
          %1021 = vmatprep.subr.bf16.mxu0 0
          %1022 = vmatpush1.bf16.msra.mxu0 %v886
          %1023 = vmatprep.subr.bf16.mxu0 0
          %1024 = vmatpush1.bf16.msra.mxu0 %v887
          %1025 = vmatprep.subr.bf16.mxu0 0
          %1026 = vmatpush1.bf16.msra.mxu0 %v888
          %1027 = vmatprep.subr.bf16.mxu0 0
          %1028 = vmatpush1.bf16.msra.mxu0 %v889
          %1029 = vmatprep.subr.bf16.mxu0 0
          %1030 = vmatpush1.bf16.msra.mxu0 %v890
          %1031 = vmatprep.subr.bf16.mxu0 0
          %1032 = vmatpush1.bf16.msra.mxu0 %v891
          %1033 = vmatprep.subr.bf16.mxu0 0
          %1034 = vmatpush1.bf16.msra.mxu0 %v892
          %1035 = vmatprep.subr.bf16.mxu0 0
          %1036 = vmatpush1.bf16.msra.mxu0 %v893
          %1037 = vmatprep.subr.bf16.mxu0 0
          %1038 = vmatpush1.bf16.msra.mxu0 %v894
          %1039 = vmatprep.mubr.bf16.mxu0 %v603
          %1040 = vmatmul.mubr.bf16.gmra.mrb[0].mxu0 %v589
          %v1041 = vpop.f32.mrb[0].mxu0
          %v1042 = vadd.f32 %v563, %v1041
          %v1043 = vpop.f32.mrb[0].mxu0
          %v1044 = vpop.f32.mrb[0].mxu0
          %v1045 = vpop.f32.mrb[0].mxu0
          %1046 = vdwg.mxu0
          %1047 = vmatprep.subr.bf16.mxu0 0
          %1048 = vmatpush1.bf16.msra.mxu0 %v895
          %1049 = vmatprep.subr.bf16.mxu0 0
          %1050 = vmatpush1.bf16.msra.mxu0 %v896
          %1051 = vmatprep.subr.bf16.mxu0 0
          %1052 = vmatpush1.bf16.msra.mxu0 %v897
          %1053 = vmatprep.subr.bf16.mxu0 0
          %1054 = vmatpush1.bf16.msra.mxu0 %v898
          %1055 = vmatprep.subr.bf16.mxu0 0
          %1056 = vmatpush1.bf16.msra.mxu0 %v899
          %1057 = vmatprep.subr.bf16.mxu0 0
          %1058 = vmatpush1.bf16.msra.mxu0 %v900
          %1059 = vmatprep.subr.bf16.mxu0 0
          %1060 = vmatpush1.bf16.msra.mxu0 %v901
          %1061 = vmatprep.subr.bf16.mxu0 0
          %1062 = vmatpush1.bf16.msra.mxu0 %v902
          %1063 = vmatprep.subr.bf16.mxu0 0
          %1064 = vmatpush1.bf16.msra.mxu0 %v903
          %1065 = vmatprep.subr.bf16.mxu0 0
          %1066 = vmatpush1.bf16.msra.mxu0 %v904
          %1067 = vmatprep.subr.bf16.mxu0 0
          %1068 = vmatpush1.bf16.msra.mxu0 %v905
          %1069 = vmatprep.subr.bf16.mxu0 0
          %1070 = vmatpush1.bf16.msra.mxu0 %v906
          %1071 = vmatprep.subr.bf16.mxu0 0
          %1072 = vmatpush1.bf16.msra.mxu0 %v907
          %1073 = vmatprep.subr.bf16.mxu0 0
          %1074 = vmatpush1.bf16.msra.mxu0 %v908
          %1075 = vmatprep.subr.bf16.mxu0 0
          %1076 = vmatpush1.bf16.msra.mxu0 %v909
          %1077 = vmatprep.subr.bf16.mxu0 0
          %1078 = vmatpush1.bf16.msra.mxu0 %v910
          %1079 = vmatprep.mubr.bf16.mxu0 %v613
          %1080 = vmatmul.mubr.bf16.gmra.mrb[0].mxu0 %v611
          %v1081 = vpop.f32.mrb[0].mxu0
          %v1082 = vadd.f32 %v1042, %v1081
          %v1083 = vpop.f32.mrb[0].mxu0
          %v1084 = vpop.f32.mrb[0].mxu0
          %v1085 = vpop.f32.mrb[0].mxu0
          %1086 = vdwg.mxu0
          %1087 = vmatprep.subr.bf16.mxu0 0
          %1088 = vmatpush1.bf16.msra.mxu0 %v911
          %1089 = vmatprep.subr.bf16.mxu0 0
          %1090 = vmatpush1.bf16.msra.mxu0 %v912
          %1091 = vmatprep.subr.bf16.mxu0 0
          %1092 = vmatpush1.bf16.msra.mxu0 %v913
          %1093 = vmatprep.subr.bf16.mxu0 0
          %1094 = vmatpush1.bf16.msra.mxu0 %v914
          %1095 = vmatprep.subr.bf16.mxu0 0
          %1096 = vmatpush1.bf16.msra.mxu0 %v915
          %1097 = vmatprep.subr.bf16.mxu0 0
          %1098 = vmatpush1.bf16.msra.mxu0 %v916
          %1099 = vmatprep.subr.bf16.mxu0 0
          %1100 = vmatpush1.bf16.msra.mxu0 %v917
          %1101 = vmatprep.subr.bf16.mxu0 0
          %1102 = vmatpush1.bf16.msra.mxu0 %v918
          %1103 = vmatprep.subr.bf16.mxu0 0
          %1104 = vmatpush1.bf16.msra.mxu0 %v919
          %1105 = vmatprep.subr.bf16.mxu0 0
          %1106 = vmatpush1.bf16.msra.mxu0 %v920
          %1107 = vmatprep.subr.bf16.mxu0 0
          %1108 = vmatpush1.bf16.msra.mxu0 %v921
          %1109 = vmatprep.subr.bf16.mxu0 0
          %1110 = vmatpush1.bf16.msra.mxu0 %v922
          %1111 = vmatprep.subr.bf16.mxu0 0
          %1112 = vmatpush1.bf16.msra.mxu0 %v923
          %1113 = vmatprep.subr.bf16.mxu0 0
          %1114 = vmatpush1.bf16.msra.mxu0 %v924
          %1115 = vmatprep.subr.bf16.mxu0 0
          %1116 = vmatpush1.bf16.msra.mxu0 %v925
          %1117 = vmatprep.subr.bf16.mxu0 0
          %1118 = vmatpush1.bf16.msra.mxu0 %v926
          %1119 = vmatprep.mubr.bf16.mxu0 %v610
          %1120 = vmatmul.mubr.bf16.gmra.mrb[0].mxu0 %v596
          %v1121 = vpop.f32.mrb[0].mxu0
          %v1122 = vadd.f32 %v1082, %v1121
          %v1123 = vpop.f32.mrb[0].mxu0
          %v1124 = vpop.f32.mrb[0].mxu0
          %v1125 = vpop.f32.mrb[0].mxu0
          %1126 = vdwg.mxu0
          %1127 = vmatprep.subr.bf16.mxu0 0
          %1128 = vmatpush1.bf16.msra.mxu0 %v927
          %1129 = vmatprep.subr.bf16.mxu0 0
          %1130 = vmatpush1.bf16.msra.mxu0 %v928
          %1131 = vmatprep.subr.bf16.mxu0 0
          %1132 = vmatpush1.bf16.msra.mxu0 %v929
          %1133 = vmatprep.subr.bf16.mxu0 0
          %1134 = vmatpush1.bf16.msra.mxu0 %v930
          %1135 = vmatprep.subr.bf16.mxu0 0
          %1136 = vmatpush1.bf16.msra.mxu0 %v931
          %1137 = vmatprep.subr.bf16.mxu0 0
          %1138 = vmatpush1.bf16.msra.mxu0 %v932
          %1139 = vmatprep.subr.bf16.mxu0 0
          %1140 = vmatpush1.bf16.msra.mxu0 %v933
          %1141 = vmatprep.subr.bf16.mxu0 0
          %1142 = vmatpush1.bf16.msra.mxu0 %v934
          %1143 = vmatprep.subr.bf16.mxu0 0
          %1144 = vmatpush1.bf16.msra.mxu0 %v935
          %1145 = vmatprep.subr.bf16.mxu0 0
          %1146 = vmatpush1.bf16.msra.mxu0 %v936
          %1147 = vmatprep.subr.bf16.mxu0 0
          %1148 = vmatpush1.bf16.msra.mxu0 %v937
          %1149 = vmatprep.subr.bf16.mxu0 0
          %1150 = vmatpush1.bf16.msra.mxu0 %v938
          %1151 = vmatprep.subr.bf16.mxu0 0
          %1152 = vmatpush1.bf16.msra.mxu0 %v939
          %1153 = vmatprep.subr.bf16.mxu0 0
          %1154 = vmatpush1.bf16.msra.mxu0 %v940
          %1155 = vmatprep.subr.bf16.mxu0 0
          %1156 = vmatpush1.bf16.msra.mxu0 %v941
          %1157 = vmatprep.subr.bf16.mxu0 0
          %1158 = vmatpush1.bf16.msra.mxu0 %v942
          %1159 = vmatprep.mubr.bf16.mxu0 %v614
          %1160 = vmatmul.mubr.bf16.gmra.mrb[0].mxu0 %v612
          %v1161 = vpop.f32.mrb[0].mxu0
          %v1162 = vadd.f32 %v1122, %v1161
          %v1163 = vpop.f32.mrb[0].mxu0
          %v1164 = vpop.f32.mrb[0].mxu0
          %v1165 = vpop.f32.mrb[0].mxu0
          %1166 = vdwg.mxu0
          %v1167 = vmax.f32 %v1162, 0.0
          %v1168 = vpack.c.bf16 %v1167, %v1167
          %v1169 = vld [vmem:[%s5] sm:$0xf]
          %v1170 = vld [vmem:[%s5 + $0x4] sm:$0xf]
          %v1171 = vld [vmem:[%s5 + $0x8] sm:$0xf]
          %v1172 = vld [vmem:[%s5 + $0xc] sm:$0xf]
          %v1173 = vld [vmem:[%s6] sm:$0x1]
          %v1175 = vlaneseq
          %v1176 = vshrl.u32 %v1175, 7
          %v1177 = vsub.s32 0, %v1176
          %v1178 = vrot.slane %v1173, %v1177
          %v1184 = vunpack.c.l.b16 %v1169
          %v1185 = vunpack.c.l.b16 %v1170
          %v1186 = vunpack.c.l.b16 %v1171
          %v1187 = vunpack.c.l.b16 %v1172
          %v1188 = vpack.c.b16 %v1185, %v1184
          %v1189 = vpack.c.b16 %v1187, %v1186
          %vm1192 = vcmask 261120
          %v1194 = vsel %vm1192, %v1168, 0
          %1196 = vmatprep.subr.bf16.mxu0 0
          %1197 = vmatpush1.bf16.msra.mxu0 %v1188
          %1198 = vmatprep.subr.bf16.mxu0 0
          %1199 = vmatpush1.bf16.msra.mxu0 %v1189
          %1200 = vmatprep.subr.bf16.mxu0 0
          %1201 = vmatpush1.bf16.msra.mxu0 0
          %1202 = vmatprep.subr.bf16.mxu0 0
          %1203 = vmatpush1.bf16.msra.mxu0 0
          %1204 = vmatprep.subr.bf16.mxu0 0
          %1205 = vmatpush1.bf16.msra.mxu0 0
          %1206 = vmatprep.subr.bf16.mxu0 0
          %1207 = vmatpush1.bf16.msra.mxu0 0
          %1208 = vmatprep.subr.bf16.mxu0 0
          %1209 = vmatpush1.bf16.msra.mxu0 0
          %1210 = vmatprep.subr.bf16.mxu0 0
          %1211 = vmatpush1.bf16.msra.mxu0 0
          %1212 = vmatprep.subr.bf16.mxu0 0
          %1213 = vmatpush1.bf16.msra.mxu0 0
          %1214 = vmatprep.subr.bf16.mxu0 0
          %1215 = vmatpush1.bf16.msra.mxu0 0
          %1216 = vmatprep.subr.bf16.mxu0 0
          %1217 = vmatpush1.bf16.msra.mxu0 0
          %1218 = vmatprep.subr.bf16.mxu0 0
          %1219 = vmatpush1.bf16.msra.mxu0 0
          %1220 = vmatprep.subr.bf16.mxu0 0
          %1221 = vmatpush1.bf16.msra.mxu0 0
          %1222 = vmatprep.subr.bf16.mxu0 0
          %1223 = vmatpush1.bf16.msra.mxu0 0
          %1224 = vmatprep.subr.bf16.mxu0 0
          %1225 = vmatpush1.bf16.msra.mxu0 0
          %1226 = vmatprep.subr.bf16.mxu0 0
          %1227 = vmatpush1.bf16.msra.mxu0 0
          %1228 = vmatprep.mubr.bf16.mxu0 0
          %1229 = vmatmul.mubr.bf16.gmra.mrb[0].mxu0 %v1194
          %v1230 = vpop.f32.mrb[0].mxu0
          %v1231 = vadd.f32 %v1178, %v1230
          %v1232 = vpop.f32.mrb[0].mxu0
          %v1233 = vpop.f32.mrb[0].mxu0
          %v1234 = vpop.f32.mrb[0].mxu0
          %1235 = vdwg.mxu0
          %1236 = vst [vmem:[#allocation2] sm:$0x3] %v1231
        $region60: #{encoder_model_forward.1} parent=55 // pred_fallthru
          _
        %v1237 = vld [vmem:[%s409] sm:$0x3]
        %v1238 = vld [vmem:[%s3] sm:$0xf]
        %v1239 = vld [vmem:[%s3 + $0x4] sm:$0xf]
        %v1240 = vld [vmem:[%s3 + $0x8] sm:$0xf]
        %v1241 = vld [vmem:[%s3 + $0xc] sm:$0xf]
        %v1242 = vld [vmem:[%s3 + $0x10] sm:$0xf]
        %v1243 = vld [vmem:[%s3 + $0x14] sm:$0xf]
        %v1244 = vld [vmem:[%s3 + $0x18] sm:$0xf]
        %v1245 = vld [vmem:[%s3 + $0x1c] sm:$0xf]
        %v1246 = vld [vmem:[%s3 + $0x20] sm:$0xf]
        %v1247 = vld [vmem:[%s3 + $0x24] sm:$0xf]
        %v1248 = vld [vmem:[%s3 + $0x28] sm:$0xf]
        %v1249 = vld [vmem:[%s3 + $0x2c] sm:$0xf]
        %v1250 = vld [vmem:[%s3 + $0x30] sm:$0xf]
        %v1251 = vld [vmem:[%s3 + $0x34] sm:$0xf]
        %v1252 = vld [vmem:[%s3 + $0x38] sm:$0xf]
        %v1253 = vld [vmem:[%s3 + $0x3c] sm:$0xf]
        %v1254 = vld [vmem:[%s3 + $0x40] sm:$0xf]
        %v1255 = vld [vmem:[%s3 + $0x44] sm:$0xf]
        %v1256 = vld [vmem:[%s3 + $0x48] sm:$0xf]
        %v1257 = vld [vmem:[%s3 + $0x4c] sm:$0xf]
        %v1258 = vld [vmem:[%s3 + $0x50] sm:$0xf]
        %v1259 = vld [vmem:[%s3 + $0x54] sm:$0xf]
        %v1260 = vld [vmem:[%s3 + $0x58] sm:$0xf]
        %v1261 = vld [vmem:[%s3 + $0x5c] sm:$0xf]
        %v1262 = vld [vmem:[%s3 + $0x60] sm:$0xf]
        %v1263 = vld [vmem:[%s3 + $0x64] sm:$0xf]
        %v1264 = vld [vmem:[%s3 + $0x68] sm:$0xf]
        %v1265 = vld [vmem:[%s3 + $0x6c] sm:$0xf]
        %v1266 = vld [vmem:[%s3 + $0x70] sm:$0xf]
        %v1267 = vld [vmem:[%s3 + $0x74] sm:$0xf]
        %v1268 = vld [vmem:[%s3 + $0x78] sm:$0xf]
        %v1269 = vld [vmem:[%s3 + $0x7c] sm:$0xf]
        %v1270 = vld [vmem:[%s4] sm:$0x1]
        %v1272 = vlaneseq
        %v1273 = vshrl.u32 %v1272, 7
        %v1274 = vsub.s32 0, %v1273
        %v1275 = vrot.slane %v1270, %v1274
        %v1279 = vunpack.c.l.s4 1966171168
        %v1280 = vunpack.c.0.s8 %v1279
        %v1281 = vlaneseq
        %v1282 = vshrl.u32 %v1281, 7
        %v1283 = vsub.s32 %v1280, %v1282
        %v1284 = vrot.slane %v1237, %v1283
        %v1285 = vcombine.high %v1284, %v1284
        %v1287 = vunpack.c.l.s4 1966171168
        %v1288 = vunpack.c.0.s8 %v1287
        %v1289 = vlaneseq
        %v1290 = vshrl.u32 %v1289, 7
        %v1291 = vsub.s32 %v1288, %v1290
        %v1292 = vrot.slane %v1284, %v1291
        %v1294 = vunpack.c.l.s4 1966171168
        %v1295 = vunpack.c.0.s8 %v1294
        %v1296 = vlaneseq
        %v1297 = vshrl.u32 %v1296, 7
        %v1298 = vsub.s32 %v1295, %v1297
        %v1299 = vrot.slane %v1285, %v1298
        %v1334 = vunpack.c.l.b16 %v1238
        %v1335 = vunpack.c.l.b16 %v1239
        %v1336 = vunpack.c.l.b16 %v1240
        %v1337 = vunpack.c.l.b16 %v1241
        %v1338 = vunpack.c.l.b16 %v1242
        %v1339 = vunpack.c.l.b16 %v1243
        %v1340 = vunpack.c.l.b16 %v1244
        %v1341 = vunpack.c.l.b16 %v1245
        %v1342 = vunpack.c.l.b16 %v1246
        %v1343 = vunpack.c.l.b16 %v1247
        %v1344 = vunpack.c.l.b16 %v1248
        %v1345 = vunpack.c.l.b16 %v1249
        %v1346 = vunpack.c.l.b16 %v1250
        %v1347 = vunpack.c.l.b16 %v1251
        %v1348 = vunpack.c.l.b16 %v1252
        %v1349 = vunpack.c.l.b16 %v1253
        %v1350 = vunpack.c.l.b16 %v1254
        %v1351 = vunpack.c.l.b16 %v1255
        %v1352 = vunpack.c.l.b16 %v1256
        %v1353 = vunpack.c.l.b16 %v1257
        %v1354 = vunpack.c.l.b16 %v1258
        %v1355 = vunpack.c.l.b16 %v1259
        %v1356 = vunpack.c.l.b16 %v1260
        %v1357 = vunpack.c.l.b16 %v1261
        %v1358 = vunpack.c.l.b16 %v1262
        %v1359 = vunpack.c.l.b16 %v1263
        %v1360 = vunpack.c.l.b16 %v1264
        %v1361 = vunpack.c.l.b16 %v1265
        %v1362 = vunpack.c.l.b16 %v1266
        %v1363 = vunpack.c.l.b16 %v1267
        %v1364 = vunpack.c.l.b16 %v1268
        %v1365 = vunpack.c.l.b16 %v1269
        %v1366 = vpack.c.b16 %v1335, %v1334
        %v1367 = vpack.c.b16 %v1337, %v1336
        %v1368 = vpack.c.b16 %v1339, %v1338
        %v1369 = vpack.c.b16 %v1341, %v1340
        %v1370 = vpack.c.b16 %v1343, %v1342
        %v1371 = vpack.c.b16 %v1345, %v1344
        %v1372 = vpack.c.b16 %v1347, %v1346
        %v1373 = vpack.c.b16 %v1349, %v1348
        %v1374 = vpack.c.b16 %v1351, %v1350
        %v1375 = vpack.c.b16 %v1353, %v1352
        %v1376 = vpack.c.b16 %v1355, %v1354
        %v1377 = vpack.c.b16 %v1357, %v1356
        %v1378 = vpack.c.b16 %v1359, %v1358
        %v1379 = vpack.c.b16 %v1361, %v1360
        %v1380 = vpack.c.b16 %v1363, %v1362
        %v1381 = vpack.c.b16 %v1365, %v1364
        %1398 = vmatprep.subr.bf16.mxu0 0
        %1399 = vmatpush1.bf16.msra.mxu0 %v1366
        %1400 = vmatprep.subr.bf16.mxu0 0
        %1401 = vmatpush1.bf16.msra.mxu0 %v1367
        %1402 = vmatprep.subr.bf16.mxu0 0
        %1403 = vmatpush1.bf16.msra.mxu0 %v1368
        %1404 = vmatprep.subr.bf16.mxu0 0
        %1405 = vmatpush1.bf16.msra.mxu0 %v1369
        %1406 = vmatprep.subr.bf16.mxu0 0
        %1407 = vmatpush1.bf16.msra.mxu0 %v1370
        %1408 = vmatprep.subr.bf16.mxu0 0
        %1409 = vmatpush1.bf16.msra.mxu0 %v1371
        %1410 = vmatprep.subr.bf16.mxu0 0
        %1411 = vmatpush1.bf16.msra.mxu0 %v1372
        %1412 = vmatprep.subr.bf16.mxu0 0
        %1413 = vmatpush1.bf16.msra.mxu0 %v1373
        %1414 = vmatprep.subr.bf16.mxu0 0
        %1415 = vmatpush1.bf16.msra.mxu0 %v1374
        %1416 = vmatprep.subr.bf16.mxu0 0
        %1417 = vmatpush1.bf16.msra.mxu0 %v1375
        %1418 = vmatprep.subr.bf16.mxu0 0
        %1419 = vmatpush1.bf16.msra.mxu0 %v1376
        %1420 = vmatprep.subr.bf16.mxu0 0
        %1421 = vmatpush1.bf16.msra.mxu0 %v1377
        %1422 = vmatprep.subr.bf16.mxu0 0
        %1423 = vmatpush1.bf16.msra.mxu0 %v1378
        %1424 = vmatprep.subr.bf16.mxu0 0
        %1425 = vmatpush1.bf16.msra.mxu0 %v1379
        %1426 = vmatprep.subr.bf16.mxu0 0
        %1427 = vmatpush1.bf16.msra.mxu0 %v1380
        %1428 = vmatprep.subr.bf16.mxu0 0
        %1429 = vmatpush1.bf16.msra.mxu0 %v1381
        %1430 = vmatprep.mubr.bf16.mxu0 %v1299
        %1431 = vmatmul.mubr.bf16.gmra.mrb[0].mxu0 %v1292
        %v1432 = vpop.f32.mrb[0].mxu0
        %v1433 = vadd.f32 %v1275, %v1432
        %v1434 = vpop.f32.mrb[0].mxu0
        %v1435 = vpop.f32.mrb[0].mxu0
        %v1436 = vpop.f32.mrb[0].mxu0
        %1437 = vdwg.mxu0
        %v1438 = vmax.f32 %v1433, 0.0
        %v1439 = vld [vmem:[#allocation4] sm:$0x3]
        %v1440 = vpack.c.bf16 %v1438, %v1438
        %v1441 = vld [vmem:[%s414] sm:$0xf]
        %v1442 = vld [vmem:[%s414 + $0x4] sm:$0xf]
        %v1443 = vld [vmem:[%s414 + $0x8] sm:$0xf]
        %v1444 = vld [vmem:[%s414 + $0xc] sm:$0xf]
        %v1449 = vunpack.c.l.b16 %v1441
        %v1450 = vunpack.c.l.b16 %v1442
        %v1451 = vunpack.c.l.b16 %v1443
        %v1452 = vunpack.c.l.b16 %v1444
        %v1453 = vpack.c.b16 %v1450, %v1449
        %v1454 = vpack.c.b16 %v1452, %v1451
        %vm1457 = vcmask 261120
        %v1459 = vsel %vm1457, %v1440, 0
        %1461 = vmatprep.subr.bf16.mxu0 0
        %1462 = vmatpush1.bf16.msra.mxu0 %v1453
        %1463 = vmatprep.subr.bf16.mxu0 0
        %1464 = vmatpush1.bf16.msra.mxu0 %v1454
        %1465 = vmatprep.subr.bf16.mxu0 0
        %1466 = vmatpush1.bf16.msra.mxu0 0
        %1467 = vmatprep.subr.bf16.mxu0 0
        %1468 = vmatpush1.bf16.msra.mxu0 0
        %1469 = vmatprep.subr.bf16.mxu0 0
        %1470 = vmatpush1.bf16.msra.mxu0 0
        %1471 = vmatprep.subr.bf16.mxu0 0
        %1472 = vmatpush1.bf16.msra.mxu0 0
        %1473 = vmatprep.subr.bf16.mxu0 0
        %1474 = vmatpush1.bf16.msra.mxu0 0
        %1475 = vmatprep.subr.bf16.mxu0 0
        %1476 = vmatpush1.bf16.msra.mxu0 0
        %1477 = vmatprep.subr.bf16.mxu0 0
        %1478 = vmatpush1.bf16.msra.mxu0 0
        %1479 = vmatprep.subr.bf16.mxu0 0
        %1480 = vmatpush1.bf16.msra.mxu0 0
        %1481 = vmatprep.subr.bf16.mxu0 0
        %1482 = vmatpush1.bf16.msra.mxu0 0
        %1483 = vmatprep.subr.bf16.mxu0 0
        %1484 = vmatpush1.bf16.msra.mxu0 0
        %1485 = vmatprep.subr.bf16.mxu0 0
        %1486 = vmatpush1.bf16.msra.mxu0 0
        %1487 = vmatprep.subr.bf16.mxu0 0
        %1488 = vmatpush1.bf16.msra.mxu0 0
        %1489 = vmatprep.subr.bf16.mxu0 0
        %1490 = vmatpush1.bf16.msra.mxu0 0
        %1491 = vmatprep.subr.bf16.mxu0 0
        %1492 = vmatpush1.bf16.msra.mxu0 0
        %1493 = vmatprep.mubr.bf16.mxu0 0
        %1494 = vmatmul.mubr.bf16.gmra.mrb[0].mxu0 %v1459
        %v1495 = vpop.f32.mrb[0].mxu0
        %v1496 = vadd.f32 0.0, %v1495
        %v1497 = vpop.f32.mrb[0].mxu0
        %v1498 = vpop.f32.mrb[0].mxu0
        %v1499 = vpop.f32.mrb[0].mxu0
        %1500 = vdwg.mxu0
        %v1501 = vadd.f32 %v1439, %v1496
        %1502 = vst [vmem:[#allocation4] sm:$0x3] %v1501
        // Predicated region
        $region61: #{encoder_model_forward.1} parent=55 // pred_check
          %p1503 = pneg %p260
        $region62: #{encoder_model_forward.1} parent=55 // pred_check_branch
          %1505 = sbr.rel (%p1503) target = $region64
        $region63: #{encoder_model_forward.1} parent=55 // pred_region
          %s1507 = ssub.s32 32, 32
          %1508 = vsyncadd [#allocation3], %s1507
          %s1509 = smul.addr %s28, 32
          %s1510 = scalar_lea.hbm %s9, %s1509
          %s1512 = sshll.u32 [#allocation2], 4
          %s1513 = int_to_ptr.vmem [resolvable:$true] %s1512
          %1515 = dma.vmem_to_hbm [thread:$0]  %s1513, 32, %s1510, [#allocation3]
        $region64: #{encoder_model_forward.1} parent=55 // pred_fallthru
          _
        // Predicated region
        $region65: #{encoder_model_forward.1} parent=55 // pred_check
          %p1516 = pneg %p286
        $region66: #{encoder_model_forward.1} parent=55 // pred_check_branch
          %1518 = sbr.rel (%p1516) target = $region68
        $region67: #{encoder_model_forward.1} parent=55 // pred_region
          %s1520 = ssub.s32 32, 32
          %1521 = vsyncadd [#allocation5], %s1520
          %s1522 = smul.addr %s28, 32
          %s1523 = scalar_lea.hbm %s10, %s1522
          %s1525 = sshll.u32 [#allocation4], 4
          %s1526 = int_to_ptr.vmem [resolvable:$true] %s1525
          %1528 = dma.vmem_to_hbm [thread:$0]  %s1526, 32, %s1523, [#allocation5]
        $region68: #{encoder_model_forward.1} parent=55 // pred_fallthru
          _
        // Predicated region
        $region69: #{encoder_model_forward.1} parent=55 // pred_check
          %p1529 = pneg %p260
        $region70: #{encoder_model_forward.1} parent=55 // pred_check_branch
          %1531 = sbr.rel (%p1529) target = $region72
        $region71: #{encoder_model_forward.1} parent=55 // pred_region
          %1532 = dma.done [#allocation3], 32
        $region72: #{encoder_model_forward.1} parent=55 // pred_fallthru
          _
        // Predicated region
        $region73: #{encoder_model_forward.1} parent=55 // pred_check
          %p1533 = pneg %p286
        $region74: #{encoder_model_forward.1} parent=55 // pred_check_branch
          %1535 = sbr.rel (%p1533) target = $region76
        $region75: #{encoder_model_forward.1} parent=55 // pred_region
          %1536 = dma.done [#allocation5], 32
        $region76: #{encoder_model_forward.1} parent=55 // pred_fallthru
          _
      $region56: #{encoder_model_forward.1} parent=5 // pred_fallthru
        _
      %p1537 = scmp.le.s32.totalorder 2, %s19
      // Predicated region
      $region77: #{encoder_model_forward.1} parent=5 // pred_check
        %p1538 = pneg %p1537
      $region78: #{encoder_model_forward.1} parent=5 // pred_check_branch
        %1540 = sbr.rel (%p1538) target = $region80
      $region79: #{encoder_model_forward.1} parent=5 // pred_region
        %s1541 = ssub.s32 %s19, 2
      $region80: #{encoder_model_forward.1} parent=5 // pred_fallthru
        _
    $region6: #{encoder_model_forward.1} parent=1 // loop_footer
      %s23 = sadd.s32 1, %s19
    $region7: #{encoder_model_forward.1} parent=1 // loop_footer_branch
      %18 = sbr.rel target = $region3
    $region8: #{encoder_model_forward.1} parent=1 // loop_exit
      _
    %1542 = vsyncpa [#allocation3], 1
    %s1543 = scalar_lea.sflag [#allocation3], 1
    %1544 = vsyncpa %s1543, 1
    %1545 = vsyncpa [#allocation5], 1

</llo_original>
